<compile_context>
chip_gen: v6e
topology: v6e:2x2x1
jax: 0.10.0
libtpu: 0.0.40
codegen_flags: <defaults>
</compile_context>

<pallas_src>
import math

import jax
import jax.numpy as jnp
from jax import lax
from jax.experimental import pallas as pl
from jax.experimental.pallas import tpu as pltpu

NUM_PROP = 7
CAT_PROP = 3
IN_DIM = NUM_PROP + CAT_PROP
HIDDEN = 32
ENCODER_DIM = 32
NUM_CLASSES = 2
GRAPHLET_DIM = 16
KNN = 5
SRC_PAIR_LOSS_W = 0.0  # module default src_pair_loss=0 -> simple_mmd_kernel skipped
COEFF = {"LAMBDA": 1.0, "LAMBDA_GP": 10.0}

BN_SCALE = 1.0 / math.sqrt(1.0 + 1e-5)  # BatchNorm1d eval: mean=0, var=1, eps=1e-5
AGG_DTYPE = jnp.bfloat16                # adjacency / aggregation operand dtype
VMEM_LIMIT = 64 * 1024 * 1024           # raise scoped VMEM (default 16/32 MiB)


def _single_buffer_kwargs():
    """kwargs to single-buffer the N x N adjacency (grid=(1,): nothing to pipeline)."""
    if not hasattr(pl, "Buffered"):
        return {}
    try:
        pl.BlockSpec((8, 128), lambda i: (0, 0),
                     pipeline_mode=pl.Buffered(buffer_count=1))
        return {"pipeline_mode": pl.Buffered(buffer_count=1)}
    except Exception:  # API shape differs on this JAX version -> keep default
        return {}


_ADJ_KW = _single_buffer_kwargs()


# -----------------------------------------------------------------------------
# Kernel 1: fused BotGCNEncoder forward (ONE launch for all graphs,
#           block-diagonal adjacency, num/cat+input linears pre-folded)
# -----------------------------------------------------------------------------
def _encoder_kernel(x_ref, a_ref, wf_ref, bf_ref, wg1_ref, bg1_ref,
                    wg2_ref, bg2_ref, o_ref):
    x = x_ref[...]
    a = a_ref[...]  # bfloat16 normalised (block-diagonal) adjacency [N, N]

    # folded (num|cat linears) @ W_in, then ReLU; dropout = identity (eval)
    h = jnp.maximum(
        jnp.dot(x, wf_ref[...], preferred_element_type=jnp.float32) + bf_ref[...],
        0.0)
    # BatchNorm1d eval (fresh running stats): constant scale
    h = h * BN_SCALE
    # gnn1: A_norm @ (h @ W) + b, ReLU (+ dropout identity)
    h1 = jnp.dot(h, wg1_ref[...], preferred_element_type=jnp.float32)
    h1 = jnp.maximum(
        jnp.dot(a, h1.astype(a.dtype), preferred_element_type=jnp.float32)
        + bg1_ref[...], 0.0)
    # gnn2
    h2 = jnp.dot(h1, wg2_ref[...], preferred_element_type=jnp.float32)
    o_ref[...] = (jnp.dot(a, h2.astype(a.dtype), preferred_element_type=jnp.float32)
                  + bg2_ref[...])


def encoder_forward(p, x, a_norm_bf16):
    """Whole BotGCNEncoder in one pallas_call; all weights (<10 KiB) in VMEM."""
    n = x.shape[0]
    h, hh = HIDDEN, HIDDEN // 2

    # Pack num/cat linears into one block-diagonal [10, 32] weight, then fold
    # it into the input linear (no activation between them in the reference):
    #   relu((x @ W_nc + b_nc) @ W_in + b_in) == relu(x @ (W_nc@W_in) + (b_nc@W_in+b_in))
    w_nc = jnp.zeros((IN_DIM, h), jnp.float32)
    w_nc = w_nc.at[:NUM_PROP, :hh].set(p["W_num"])
    w_nc = w_nc.at[NUM_PROP:, hh:].set(p["W_cat"])
    b_nc = jnp.concatenate([p["b_num"], p["b_cat"]])
    w_fused = jnp.dot(w_nc, p["W_in"])                          # [10, 32]
    b_fused = (jnp.dot(b_nc, p["W_in"]) + p["b_in"]).reshape(1, h)

    return pl.pallas_call(
        _encoder_kernel,
        out_shape=jax.ShapeDtypeStruct((n, h), jnp.float32),
        grid=(1,),
        in_specs=[
            pl.BlockSpec((n, IN_DIM), lambda i: (0, 0)),
            pl.BlockSpec((n, n), lambda i: (0, 0), **_ADJ_KW),
            pl.BlockSpec((IN_DIM, h), lambda i: (0, 0)),
            pl.BlockSpec((1, h), lambda i: (0, 0)),
            pl.BlockSpec((h, h), lambda i: (0, 0)),
            pl.BlockSpec((1, h), lambda i: (0, 0)),
            pl.BlockSpec((h, h), lambda i: (0, 0)),
            pl.BlockSpec((1, h), lambda i: (0, 0)),
        ],
        out_specs=pl.BlockSpec((n, h), lambda i: (0, 0)),
        compiler_params=pltpu.CompilerParams(vmem_limit_bytes=VMEM_LIMIT),
    )(
        x.astype(jnp.float32),
        a_norm_bf16.astype(AGG_DTYPE),
        w_fused, b_fused,
        p["Wg1"], p["bg1"].reshape(1, h),
        p["Wg2"], p["bg2"].reshape(1, h),
    )


# -----------------------------------------------------------------------------
# Kernel 2: tiled cosine-similarity matrix  normalize(x) @ normalize(y).T
#           (pre-normalised + pre-transposed in the wrapper -> pure matmul)
# -----------------------------------------------------------------------------
def _cosine_kernel(xn_ref, ynt_ref, o_ref):
    o_ref[...] = jnp.dot(xn_ref[...], ynt_ref[...],
                         preferred_element_type=jnp.float32)


def pallas_cosine_sim(x, y, *, tm=512, tn=512):
    """Tiled normalize(x) @ normalize(y).T with no pad/slice HBM round-trips."""
    x = x.astype(jnp.float32)
    y = y.astype(jnp.float32)
    m, d = x.shape
    n, _ = y.shape
    # F.normalize(., eps=1e-12): x / max(||x||, 1e-12) == x * rsqrt(max(||x||^2, 1e-24))
    # Normalise ONCE here (tiny N x d pass) so tiles are not re-normalised.
    xn = x * lax.rsqrt(jnp.maximum(jnp.sum(x * x, axis=1, keepdims=True), 1e-24))
    yn = y * lax.rsqrt(jnp.maximum(jnp.sum(y * y, axis=1, keepdims=True), 1e-24))
    ynt = yn.T  # [d, n]: avoids any per-tile transpose inside the kernel

    tm_ = m if m <= tm else tm   # full-dim blocks are always legal; 512 is 8-aligned
    tn_ = n if n <= tn else tn
    grid = (pl.cdiv(m, tm_), pl.cdiv(n, tn_))
    return pl.pallas_call(
        _cosine_kernel,
        out_shape=jax.ShapeDtypeStruct((m, n), jnp.float32),
        grid=grid,
        in_specs=[
            pl.BlockSpec((tm_, d), lambda i, j: (i, 0)),
            pl.BlockSpec((d, tn_), lambda i, j: (0, j)),
        ],
        out_specs=pl.BlockSpec((tm_, tn_), lambda i, j: (i, j)),
        compiler_params=pltpu.CompilerParams(
            dimension_semantics=("parallel", "parallel"),
            vmem_limit_bytes=VMEM_LIMIT),
    )(xn, ynt)


# -----------------------------------------------------------------------------
# Kernel 3: fused cross-domain GCN propagate + Attention combine
# -----------------------------------------------------------------------------
def _cross_kernel(emb_ref, a_ref, wc_ref, bc_ref, watt_ref, batt_ref, o_ref):
    emb = emb_ref[...]
    a = a_ref[...]  # bfloat16 normalised mixup adjacency
    h = jnp.dot(emb, wc_ref[...], preferred_element_type=jnp.float32)
    upd = (jnp.dot(a, h.astype(a.dtype), preferred_element_type=jnp.float32)
           + bc_ref[...])
    # Attention over stacked [emb, upd]; the [N,1] scores never leave VMEM.
    s0 = jnp.dot(emb, watt_ref[...], preferred_element_type=jnp.float32) + batt_ref[...]
    s1 = jnp.dot(upd, watt_ref[...], preferred_element_type=jnp.float32) + batt_ref[...]
    m = jnp.maximum(s0, s1)
    a0 = jnp.exp(s0 - m)
    a1 = jnp.exp(s1 - m)
    inv = pl.reciprocal(a0 + a1, approx=True)
    o_ref[...] = (a0 * emb + a1 * upd) * inv


def pallas_cross_propagate(emb, a_norm, wc, bc, w_att, b_att):
    n, h = emb.shape
    return pl.pallas_call(
        _cross_kernel,
        out_shape=jax.ShapeDtypeStruct((n, h), jnp.float32),
        grid=(1,),
        in_specs=[
            pl.BlockSpec((n, h), lambda i: (0, 0)),
            pl.BlockSpec((n, n), lambda i: (0, 0), **_ADJ_KW),
            pl.BlockSpec((h, h), lambda i: (0, 0)),
            pl.BlockSpec((1, h), lambda i: (0, 0)),
            pl.BlockSpec((h, 1), lambda i: (0, 0)),
            pl.BlockSpec((1, 1), lambda i: (0, 0)),
        ],
        out_specs=pl.BlockSpec((n, h), lambda i: (0, 0)),
        compiler_params=pltpu.CompilerParams(vmem_limit_bytes=VMEM_LIMIT),
    )(
        emb.astype(jnp.float32),
        a_norm.astype(AGG_DTYPE),
        wc, bc.reshape(1, h),
        w_att, b_att.reshape(1, 1),
    )


# -----------------------------------------------------------------------------
# Kernel 4: fused discriminator + classifier heads.
#   * W_disc packed with W_cls1 -> one MXU matmul; split columns in-register.
#   * per-segment means via one MXU dot against an in-kernel indicator matrix
#     built from STATIC segment boundaries (no one-hot domain matrix from HBM).
# -----------------------------------------------------------------------------
def _make_heads_kernel(boundaries):
    n_seg = len(boundaries) - 1

    def kernel(x_ref, lab_ref, wp_ref, bp_ref, w2_ref, b2_ref, o_ref):
        x = x_ref[...]          # [N_all, H]   (all source blocks + target)
        lab = lab_ref[...]      # [N_all, C]   one-hot labels (target rows unused)
        n_rows = x.shape[0]
        hid = w2_ref.shape[0]

        # packed [W_cls1 | W_disc]: one MXU matmul for both heads' first layer
        comb = (jnp.dot(x, wp_ref[...], preferred_element_type=jnp.float32)
                + bp_ref[...])                                   # [N_all, hid+1]
        hc = jnp.maximum(comb[:, :hid], 0.0)                     # classifier layer 1
        sd = 1.0 / (1.0 + jnp.exp(-comb[:, hid:hid + 1]))        # sigmoid critic [N,1]

        logits = (jnp.dot(hc, w2_ref[...], preferred_element_type=jnp.float32)
                  + b2_ref[...])                                 # [N_all, C]
        mx = jnp.max(logits, axis=1, keepdims=True)
        lse = mx + jnp.log(jnp.sum(jnp.exp(logits - mx), axis=1, keepdims=True))
        picked = jnp.sum(logits * lab, axis=1, keepdims=True)
        ce = lse - picked                                        # per-node CE [N,1]

        sdce = jnp.concatenate([sd, ce], axis=1)                 # [N_all, 2]

        # segment-mean matrix [n_seg, N_all] built from static boundaries;
        # indicator pre-scaled by 1/count so one MXU dot yields the means.
        col = lax.broadcasted_iota(jnp.int32, (1, n_rows), 1)
        rows = []
        for j in range(n_seg):
            lo, hi = boundaries[j], boundaries[j + 1]
            ind = jnp.logical_and(col >= lo, col < hi).astype(jnp.float32)
            rows.append(ind * (1.0 / float(hi - lo)))
        seg_mat = jnp.concatenate(rows, axis=0)                  # [n_seg, N_all]

        # [n_seg, 2]: column 0 = mean critic score, column 1 = mean CE
        o_ref[...] = jnp.dot(seg_mat, sdce, preferred_element_type=jnp.float32)

    return kernel


def pallas_heads(x_all, lab_onehot, p, boundaries):
    n, h = x_all.shape
    n_seg = len(boundaries) - 1
    c = lab_onehot.shape[1]
    hid = p["W_cls1"].shape[1]
    w_packed = jnp.concatenate([p["W_cls1"], p["W_disc"]], axis=1)       # [H, hid+1]
    b_packed = jnp.concatenate([p["b_cls1"], p["b_disc"]]).reshape(1, hid + 1)
    return pl.pallas_call(
        _make_heads_kernel(boundaries),
        out_shape=jax.ShapeDtypeStruct((n_seg, 2), jnp.float32),
        grid=(1,),
        in_specs=[
            pl.BlockSpec((n, h), lambda i: (0, 0)),
            pl.BlockSpec((n, c), lambda i: (0, 0)),
            pl.BlockSpec((h, hid + 1), lambda i: (0, 0)),
            pl.BlockSpec((1, hid + 1), lambda i: (0, 0)),
            pl.BlockSpec((hid, c), lambda i: (0, 0)),
            pl.BlockSpec((1, c), lambda i: (0, 0)),
        ],
        out_specs=pl.BlockSpec((n_seg, 2), lambda i: (0, 0)),
        compiler_params=pltpu.CompilerParams(vmem_limit_bytes=VMEM_LIMIT),
    )(
        x_all.astype(jnp.float32), lab_onehot,
        w_packed, b_packed,
        p["W_cls2"], p["b_cls2"].reshape(1, c),
    )


# -----------------------------------------------------------------------------
# Glue (graph normalisation, Gmix construction, weighting, losses)
# -----------------------------------------------------------------------------
def gcn_norm_dense(a_dense):
    """D^{-1/2} (A + I) D^{-1/2}, A indexed [target, source] (GCNConv norm).
    (max(A, I) == A + I for binary adjacency with no pre-existing self-loops.)"""
    n = a_dense.shape[0]
    a_hat = jnp.maximum(a_dense, jnp.eye(n, dtype=a_dense.dtype))
    deg = jnp.sum(a_hat, axis=1)
    dinv = lax.rsqrt(jnp.maximum(deg, 1e-12))
    return a_hat * dinv[:, None] * dinv[None, :]


def cross_prop_forward(p, src_embeddings, knn):
    """CrossSourceDomainMP (construct_mode='emb', gcn, cross_output='concat')."""
    n_node_list = [e.shape[0] for e in src_embeddings]
    emb = jnp.concatenate(src_embeddings, axis=0)
    n_total = emb.shape[0]

    # --- construct() ---
    # TODO(synk): at large N, fuse the intra-domain masking / top-k mask /
    # gcn_norm into the tiled cosine kernel to avoid several N x N XLA passes.
    adj = pallas_cosine_sim(emb, emb)
    dom = jnp.concatenate(
        [jnp.full((m,), i, jnp.int32) for i, m in enumerate(n_node_list)])
    intra = dom[:, None] == dom[None, :]
    adj = jnp.where(intra, 0.0, adj)                 # zero intra-domain blocks
    _, topk_idx = lax.top_k(adj, knn)
    mask = jnp.zeros_like(adj).at[jnp.arange(n_total)[:, None], topk_idx].set(1.0)
    adj_m = adj * mask
    # nonzero(adj_m) -> unweighted edges; dense A[target, source]
    # (edge (row, col) interpreted as source->target, matching PyG propagate)
    a_dense = (adj_m != 0).astype(jnp.float32).T
    a_norm = gcn_norm_dense(a_dense)

    # --- propagate (GCNConv on Gmix) + Attention([emb, updated_emb]), fused ---
    upd = pallas_cross_propagate(emb, a_norm, p["Wc"], p["bc"],
                                 p["W_att"], p["b_att"])

    src_pair_loss = jnp.float32(0.0)  # src_pair_loss weight == 0
    return src_pair_loss, upd, n_node_list


def weighting_graphlet(g_ds, g_dt, n_node_list):
    """weighting_g: cosine sim matmul (Pallas) + per-source mean + softmax."""
    sim = pallas_cosine_sim(g_ds, g_dt)
    ws = []
    off = 0
    for n in n_node_list:
        ws.append(jnp.mean(sim[off:off + n, :]))
        off += n
    return jax.nn.softmax(jnp.stack(ws))


def msgda_forward(params, src_idx_list, src_data_list, tgt_idx, tgt_data):
    # ---- Batched encoder: one launch for all graphs (block-diagonal A) ----
    graphs = list(src_data_list) + [tgt_data]
    sizes = [g["x"].shape[0] for g in graphs]
    offsets = [0]
    for s in sizes:
        offsets.append(offsets[-1] + s)
    n_tot = offsets[-1]

    x_cat = jnp.concatenate([g["x"] for g in graphs], axis=0)
    a_blk = jnp.zeros((n_tot, n_tot), AGG_DTYPE)
    for g, off, s in zip(graphs, offsets[:-1], sizes):
        a_blk = a_blk.at[off:off + s, off:off + s].set(g["a_norm"].astype(AGG_DTYPE))
    emb_all = encoder_forward(params["encoder"], x_cat, a_blk)

    all_src_emb, all_src_label, all_src_graphlet = [], [], []
    for i, (idx, data) in enumerate(zip(src_idx_list, src_data_list)):
        blk = emb_all[offsets[i]:offsets[i] + sizes[i]]
        all_src_emb.append(blk[idx])
        all_src_label.append(data["y"][idx].astype(jnp.int32))
        all_src_graphlet.append(data["x_graphlet"][idx])
    n_src = len(src_data_list)
    x_dt = emb_all[offsets[n_src]:offsets[n_src] + sizes[n_src]][tgt_idx]

    # ---- cross-source mixup graph + propagate + attention ----
    src_pair_loss, updated_x_ds, n_node_s = cross_prop_forward(
        params["cross"], all_src_emb, KNN)

    # ---- weighting == 'graphlet' ----
    w = weighting_graphlet(
        jnp.concatenate(all_src_graphlet, axis=0), tgt_data["x_graphlet"], n_node_s)

    # ---- fused discriminator + classifier heads over all sources + target ----
    n_t = x_dt.shape[0]
    x_all = jnp.concatenate([updated_x_ds, x_dt], axis=0)
    boundaries = [0]
    for m in n_node_s + [n_t]:
        boundaries.append(boundaries[-1] + m)
    labels_all = jnp.concatenate(all_src_label + [jnp.zeros((n_t,), jnp.int32)])
    # NOTE: target rows' one-hot is [1, 0]; their CE mean is computed but never
    # used below (only source-segment CE means enter clf_loss).
    lab_onehot = jax.nn.one_hot(labels_all, NUM_CLASSES, dtype=jnp.float32)

    heads = pallas_heads(x_all, lab_onehot, params, tuple(boundaries))  # [n_seg, 2]
    disc_means = heads[:, 0]
    ce_means = heads[:, 1]
    critic_dt_mean = disc_means[n_src]
    domain_loss = jnp.sum(w * jnp.abs(disc_means[:n_src] - critic_dt_mean))
    clf_loss = jnp.sum(w * ce_means[:n_src])

    total_loss = (clf_loss + COEFF["LAMBDA"] * domain_loss
                  + SRC_PAIR_LOSS_W * src_pair_loss)
    return total_loss, clf_loss, domain_loss


# -----------------------------------------------------------------------------
# Deterministic parameter / data construction
# -----------------------------------------------------------------------------
def init_params(key):
    ks = iter(jax.random.split(key, 32))

    def w(shape, scale=0.1):
        return scale * jax.random.normal(next(ks), shape, jnp.float32)

    encoder = {
        "W_num": w((NUM_PROP, HIDDEN // 2)),
        "b_num": w((HIDDEN // 2,)),
        "W_cat": w((CAT_PROP, HIDDEN // 2)),
        "b_cat": w((HIDDEN // 2,)),
        "W_in": w((HIDDEN, HIDDEN)),
        "b_in": w((HIDDEN,)),
        "Wg1": w((HIDDEN, HIDDEN)),
        "bg1": w((HIDDEN,)),
        "Wg2": w((HIDDEN, HIDDEN)),
        "bg2": w((HIDDEN,)),
    }
    cross = {
        "Wc": w((HIDDEN, HIDDEN)),
        "bc": w((HIDDEN,)),
        "W_att": w((HIDDEN, 1)),
        "b_att": w((1,)),
    }
    params = {
        "encoder": encoder,
        "cross": cross,
        "W_disc": w((ENCODER_DIM, 1)),
        "b_disc": w((1,)),
        "W_cls1": w((ENCODER_DIM, HIDDEN)),
        "b_cls1": w((HIDDEN,)),
        "W_cls2": w((HIDDEN, NUM_CLASSES)),
        "b_cls2": w((NUM_CLASSES,)),
    }
    return params


def make_graph(key, n_nodes):
    k1, k2, k3, k4 = jax.random.split(key, 4)
    x = jax.random.normal(k1, (n_nodes, IN_DIM), jnp.float32)
    # dense directed adjacency A[target, source] (plays the role of edge_index)
    a = (jax.random.uniform(k2, (n_nodes, n_nodes)) < 0.2).astype(jnp.float32)
    # bf16 copy of the normalised adjacency precomputed ONCE at data-prep time
    a_norm = gcn_norm_dense(a).astype(AGG_DTYPE)
    y = jax.random.randint(k3, (n_nodes,), 0, NUM_CLASSES).astype(jnp.float32)
    g = jax.random.normal(k4, (n_nodes, GRAPHLET_DIM), jnp.float32)
    return {"x": x, "a_norm": a_norm, "y": y, "x_graphlet": g}


if __name__ == "__main__":
    root = jax.random.PRNGKey(0)
    k_params, k_s0, k_s1, k_t = jax.random.split(root, 4)

    params = init_params(k_params)

    # two source graphs (24 nodes each, 16 training indices) + one target graph
    src_data_list = [make_graph(k_s0, 24), make_graph(k_s1, 24)]
    src_idx_list = [jnp.arange(16), jnp.arange(16)]
    tgt_data = make_graph(k_t, 20)
    tgt_idx = jnp.arange(16)

    fwd = jax.jit(msgda_forward)
    total, clf, dom = fwd(params, src_idx_list, src_data_list, tgt_idx, tgt_data)
    total = jax.block_until_ready(total)
    jax.block_until_ready(clf)
    jax.block_until_ready(dom)
    assert jnp.isfinite(total)
    print("KERNEL_OK")
</pallas_src>

<mosaic_0001>
module attributes {stable_mosaic.version = 11 : i64} {
  func.func @_encoder_kernel(%arg0: i32, %arg1: memref<68x10xf32, #tpu.memory_space<vmem>>, %arg2: memref<68x68xbf16, #tpu.memory_space<vmem>>, %arg3: memref<10x32xf32, #tpu.memory_space<vmem>>, %arg4: memref<1x32xf32, #tpu.memory_space<vmem>>, %arg5: memref<32x32xf32, #tpu.memory_space<vmem>>, %arg6: memref<1x32xf32, #tpu.memory_space<vmem>>, %arg7: memref<32x32xf32, #tpu.memory_space<vmem>>, %arg8: memref<1x32xf32, #tpu.memory_space<vmem>>, %arg9: memref<68x32xf32, #tpu.memory_space<vmem>>) attributes {dimension_semantics = [#tpu.dimension_semantics<arbitrary>], iteration_bounds = array<i64: 1>, scalar_prefetch = 0 : i64, scratch_operands = 0 : i64, tpu.core_type = #tpu.core_type<tc>, window_params = [{pipeline_mode = #tpu.pipeline_mode<synchronous>, transform_indices = @transform_0, window_bounds = array<i64: 68, 10>}, {pipeline_mode = #tpu.pipeline_mode<synchronous>, transform_indices = @transform_1, window_bounds = array<i64: 68, 68>}, {pipeline_mode = #tpu.pipeline_mode<synchronous>, transform_indices = @transform_2, window_bounds = array<i64: 10, 32>}, {pipeline_mode = #tpu.pipeline_mode<synchronous>, transform_indices = @transform_3, window_bounds = array<i64: 1, 32>}, {pipeline_mode = #tpu.pipeline_mode<synchronous>, transform_indices = @transform_4, window_bounds = array<i64: 32, 32>}, {pipeline_mode = #tpu.pipeline_mode<synchronous>, transform_indices = @transform_5, window_bounds = array<i64: 1, 32>}, {pipeline_mode = #tpu.pipeline_mode<synchronous>, transform_indices = @transform_6, window_bounds = array<i64: 32, 32>}, {pipeline_mode = #tpu.pipeline_mode<synchronous>, transform_indices = @transform_7, window_bounds = array<i64: 1, 32>}, {pipeline_mode = #tpu.pipeline_mode<synchronous>, transform_indices = @transform_8, window_bounds = array<i64: 68, 32>}]} {
    %c0 = arith.constant 0 : index
    %c0_0 = arith.constant 0 : index
    %0 = vector.load %arg1[%c0, %c0_0] : memref<68x10xf32, #tpu.memory_space<vmem>>, vector<68x10xf32>
    %c0_1 = arith.constant 0 : index
    %c0_2 = arith.constant 0 : index
    %1 = vector.load %arg2[%c0_1, %c0_2] : memref<68x68xbf16, #tpu.memory_space<vmem>>, vector<68x68xbf16>
    %c0_3 = arith.constant 0 : index
    %c0_4 = arith.constant 0 : index
    %2 = vector.load %arg3[%c0_3, %c0_4] : memref<10x32xf32, #tpu.memory_space<vmem>>, vector<10x32xf32>
    %cst = arith.constant dense<0.000000e+00> : vector<68x32xf32>
    %3 = tpu.matmul %0, %2, %cst {dimension_numbers = #tpu.dot_dimension_numbers<[1], [0], [0], [1], [0, 0, 1, 1], [], []>} : vector<68x10xf32>, vector<10x32xf32>, vector<68x32xf32> -> vector<68x32xf32>
    %c0_5 = arith.constant 0 : index
    %c0_6 = arith.constant 0 : index
    %4 = vector.load %arg4[%c0_5, %c0_6] : memref<1x32xf32, #tpu.memory_space<vmem>>, vector<1x32xf32>
    %5 = vector.broadcast %4 : vector<1x32xf32> to vector<68x32xf32>
    %6 = arith.addf %3, %5 : vector<68x32xf32>
    %cst_7 = arith.constant 0.000000e+00 : f32
    %7 = vector.broadcast %cst_7 : f32 to vector<68x32xf32>
    %8 = arith.maximumf %6, %7 : vector<68x32xf32>
    %cst_8 = arith.constant 0.999994993 : f32
    %9 = vector.broadcast %cst_8 : f32 to vector<68x32xf32>
    %10 = arith.mulf %8, %9 : vector<68x32xf32>
    %c0_9 = arith.constant 0 : index
    %c0_10 = arith.constant 0 : index
    %11 = vector.load %arg5[%c0_9, %c0_10] : memref<32x32xf32, #tpu.memory_space<vmem>>, vector<32x32xf32>
    %cst_11 = arith.constant dense<0.000000e+00> : vector<68x32xf32>
    %12 = tpu.matmul %10, %11, %cst_11 {dimension_numbers = #tpu.dot_dimension_numbers<[1], [0], [0], [1], [0, 0, 1, 1], [], []>} : vector<68x32xf32>, vector<32x32xf32>, vector<68x32xf32> -> vector<68x32xf32>
    %13 = arith.truncf %12 : vector<68x32xf32> to vector<68x32xbf16>
    %cst_12 = arith.constant dense<0.000000e+00> : vector<68x32xf32>
    %14 = tpu.matmul %1, %13, %cst_12 {dimension_numbers = #tpu.dot_dimension_numbers<[1], [0], [0], [1], [0, 0, 1, 1], [], []>} : vector<68x68xbf16>, vector<68x32xbf16>, vector<68x32xf32> -> vector<68x32xf32>
    %c0_13 = arith.constant 0 : index
    %c0_14 = arith.constant 0 : index
    %15 = vector.load %arg6[%c0_13, %c0_14] : memref<1x32xf32, #tpu.memory_space<vmem>>, vector<1x32xf32>
    %16 = vector.broadcast %15 : vector<1x32xf32> to vector<68x32xf32>
    %17 = arith.addf %14, %16 : vector<68x32xf32>
    %cst_15 = arith.constant 0.000000e+00 : f32
    %18 = vector.broadcast %cst_15 : f32 to vector<68x32xf32>
    %19 = arith.maximumf %17, %18 : vector<68x32xf32>
    %c0_16 = arith.constant 0 : index
    %c0_17 = arith.constant 0 : index
    %20 = vector.load %arg7[%c0_16, %c0_17] : memref<32x32xf32, #tpu.memory_space<vmem>>, vector<32x32xf32>
    %cst_18 = arith.constant dense<0.000000e+00> : vector<68x32xf32>
    %21 = tpu.matmul %19, %20, %cst_18 {dimension_numbers = #tpu.dot_dimension_numbers<[1], [0], [0], [1], [0, 0, 1, 1], [], []>} : vector<68x32xf32>, vector<32x32xf32>, vector<68x32xf32> -> vector<68x32xf32>
    %22 = arith.truncf %21 : vector<68x32xf32> to vector<68x32xbf16>
    %cst_19 = arith.constant dense<0.000000e+00> : vector<68x32xf32>
    %23 = tpu.matmul %1, %22, %cst_19 {dimension_numbers = #tpu.dot_dimension_numbers<[1], [0], [0], [1], [0, 0, 1, 1], [], []>} : vector<68x68xbf16>, vector<68x32xbf16>, vector<68x32xf32> -> vector<68x32xf32>
    %c0_20 = arith.constant 0 : index
    %c0_21 = arith.constant 0 : index
    %24 = vector.load %arg8[%c0_20, %c0_21] : memref<1x32xf32, #tpu.memory_space<vmem>>, vector<1x32xf32>
    %25 = vector.broadcast %24 : vector<1x32xf32> to vector<68x32xf32>
    %26 = arith.addf %23, %25 : vector<68x32xf32>
    %c0_22 = arith.constant 0 : index
    %c0_23 = arith.constant 0 : index
    %27 = vector.load %arg9[%c0_22, %c0_23] : memref<68x32xf32, #tpu.memory_space<vmem>>, vector<68x32xf32>
    tpu.vector_store %arg9[%c0_22, %c0_23], %26 {strides = array<i32>} : memref<68x32xf32, #tpu.memory_space<vmem>>, vector<68x32xf32>,
    return
  }
  func.func @transform_0(%arg0: i32) -> (i32, i32) {
    %c0_i32 = arith.constant 0 : i32
    %c0_i32_0 = arith.constant 0 : i32
    %c0_i32_1 = arith.constant 0 : i32
    return %c0_i32, %c0_i32_0 : i32, i32
  }
  func.func @transform_1(%arg0: i32) -> (i32, i32) {
    %c0_i32 = arith.constant 0 : i32
    %c0_i32_0 = arith.constant 0 : i32
    %c0_i32_1 = arith.constant 0 : i32
    return %c0_i32, %c0_i32_0 : i32, i32
  }
  func.func @transform_2(%arg0: i32) -> (i32, i32) {
    %c0_i32 = arith.constant 0 : i32
    %c0_i32_0 = arith.constant 0 : i32
    %c0_i32_1 = arith.constant 0 : i32
    return %c0_i32, %c0_i32_0 : i32, i32
  }
  func.func @transform_3(%arg0: i32) -> (i32, i32) {
    %c0_i32 = arith.constant 0 : i32
    %c0_i32_0 = arith.constant 0 : i32
    %c0_i32_1 = arith.constant 0 : i32
    return %c0_i32, %c0_i32_0 : i32, i32
  }
  func.func @transform_4(%arg0: i32) -> (i32, i32) {
    %c0_i32 = arith.constant 0 : i32
    %c0_i32_0 = arith.constant 0 : i32
    %c0_i32_1 = arith.constant 0 : i32
    return %c0_i32, %c0_i32_0 : i32, i32
  }
  func.func @transform_5(%arg0: i32) -> (i32, i32) {
    %c0_i32 = arith.constant 0 : i32
    %c0_i32_0 = arith.constant 0 : i32
    %c0_i32_1 = arith.constant 0 : i32
    return %c0_i32, %c0_i32_0 : i32, i32
  }
  func.func @transform_6(%arg0: i32) -> (i32, i32) {
    %c0_i32 = arith.constant 0 : i32
    %c0_i32_0 = arith.constant 0 : i32
    %c0_i32_1 = arith.constant 0 : i32
    return %c0_i32, %c0_i32_0 : i32, i32
  }
  func.func @transform_7(%arg0: i32) -> (i32, i32) {
    %c0_i32 = arith.constant 0 : i32
    %c0_i32_0 = arith.constant 0 : i32
    %c0_i32_1 = arith.constant 0 : i32
    return %c0_i32, %c0_i32_0 : i32, i32
  }
  func.func @transform_8(%arg0: i32) -> (i32, i32) {
    %c0_i32 = arith.constant 0 : i32
    %c0_i32_0 = arith.constant 0 : i32
    %c0_i32_1 = arith.constant 0 : i32
    return %c0_i32, %c0_i32_0 : i32, i32
  }
}

module attributes {stable_mosaic.version = 11 : i64} {
  func.func @_cosine_kernel(%arg0: i32, %arg1: i32, %arg2: memref<32x32xf32, #tpu.memory_space<vmem>>, %arg3: memref<32x32xf32, #tpu.memory_space<vmem>>, %arg4: memref<32x32xf32, #tpu.memory_space<vmem>>) attributes {dimension_semantics = [#tpu.dimension_semantics<parallel>, #tpu.dimension_semantics<parallel>], iteration_bounds = array<i64: 1, 1>, scalar_prefetch = 0 : i64, scratch_operands = 0 : i64, tpu.core_type = #tpu.core_type<tc>, window_params = [{transform_indices = @transform_0, window_bounds = array<i64: 32, 32>}, {transform_indices = @transform_1, window_bounds = array<i64: 32, 32>}, {transform_indices = @transform_2, window_bounds = array<i64: 32, 32>}]} {
    %c0 = arith.constant 0 : index
    %c0_0 = arith.constant 0 : index
    %0 = vector.load %arg2[%c0, %c0_0] : memref<32x32xf32, #tpu.memory_space<vmem>>, vector<32x32xf32>
    %c0_1 = arith.constant 0 : index
    %c0_2 = arith.constant 0 : index
    %1 = vector.load %arg3[%c0_1, %c0_2] : memref<32x32xf32, #tpu.memory_space<vmem>>, vector<32x32xf32>
    %cst = arith.constant dense<0.000000e+00> : vector<32x32xf32>
    %2 = tpu.matmul %0, %1, %cst {dimension_numbers = #tpu.dot_dimension_numbers<[1], [0], [0], [1], [0, 0, 1, 1], [], []>} : vector<32x32xf32>, vector<32x32xf32>, vector<32x32xf32> -> vector<32x32xf32>
    %c0_3 = arith.constant 0 : index
    %c0_4 = arith.constant 0 : index
    %3 = vector.load %arg4[%c0_3, %c0_4] : memref<32x32xf32, #tpu.memory_space<vmem>>, vector<32x32xf32>
    tpu.vector_store %arg4[%c0_3, %c0_4], %2 {strides = array<i32>} : memref<32x32xf32, #tpu.memory_space<vmem>>, vector<32x32xf32>,
    return
  }
  func.func @transform_0(%arg0: i32, %arg1: i32) -> (i32, i32) {
    %c0_i32 = arith.constant 0 : i32
    %c0_i32_0 = arith.constant 0 : i32
    return %arg0, %c0_i32 : i32, i32
  }
  func.func @transform_1(%arg0: i32, %arg1: i32) -> (i32, i32) {
    %c0_i32 = arith.constant 0 : i32
    %c0_i32_0 = arith.constant 0 : i32
    return %c0_i32, %arg1 : i32, i32
  }
  func.func @transform_2(%arg0: i32, %arg1: i32) -> (i32, i32) {
    %c0_i32 = arith.constant 0 : i32
    return %arg0, %arg1 : i32, i32
  }
}

module attributes {stable_mosaic.version = 11 : i64} {
  func.func @_cross_kernel(%arg0: i32, %arg1: memref<32x32xf32, #tpu.memory_space<vmem>>, %arg2: memref<32x32xbf16, #tpu.memory_space<vmem>>, %arg3: memref<32x32xf32, #tpu.memory_space<vmem>>, %arg4: memref<1x32xf32, #tpu.memory_space<vmem>>, %arg5: memref<32x1xf32, #tpu.memory_space<vmem>>, %arg6: memref<1x1xf32, #tpu.memory_space<vmem>>, %arg7: memref<32x32xf32, #tpu.memory_space<vmem>>) attributes {dimension_semantics = [#tpu.dimension_semantics<arbitrary>], iteration_bounds = array<i64: 1>, scalar_prefetch = 0 : i64, scratch_operands = 0 : i64, tpu.core_type = #tpu.core_type<tc>, window_params = [{pipeline_mode = #tpu.pipeline_mode<synchronous>, transform_indices = @transform_0, window_bounds = array<i64: 32, 32>}, {pipeline_mode = #tpu.pipeline_mode<synchronous>, transform_indices = @transform_1, window_bounds = array<i64: 32, 32>}, {pipeline_mode = #tpu.pipeline_mode<synchronous>, transform_indices = @transform_2, window_bounds = array<i64: 32, 32>}, {pipeline_mode = #tpu.pipeline_mode<synchronous>, transform_indices = @transform_3, window_bounds = array<i64: 1, 32>}, {pipeline_mode = #tpu.pipeline_mode<synchronous>, transform_indices = @transform_4, window_bounds = array<i64: 32, 1>}, {pipeline_mode = #tpu.pipeline_mode<synchronous>, transform_indices = @transform_5, window_bounds = array<i64: 1, 1>}, {pipeline_mode = #tpu.pipeline_mode<synchronous>, transform_indices = @transform_6, window_bounds = array<i64: 32, 32>}]} {
    %c0 = arith.constant 0 : index
    %c0_0 = arith.constant 0 : index
    %0 = vector.load %arg1[%c0, %c0_0] : memref<32x32xf32, #tpu.memory_space<vmem>>, vector<32x32xf32>
    %c0_1 = arith.constant 0 : index
    %c0_2 = arith.constant 0 : index
    %1 = vector.load %arg2[%c0_1, %c0_2] : memref<32x32xbf16, #tpu.memory_space<vmem>>, vector<32x32xbf16>
    %c0_3 = arith.constant 0 : index
    %c0_4 = arith.constant 0 : index
    %2 = vector.load %arg3[%c0_3, %c0_4] : memref<32x32xf32, #tpu.memory_space<vmem>>, vector<32x32xf32>
    %cst = arith.constant dense<0.000000e+00> : vector<32x32xf32>
    %3 = tpu.matmul %0, %2, %cst {dimension_numbers = #tpu.dot_dimension_numbers<[1], [0], [0], [1], [0, 0, 1, 1], [], []>} : vector<32x32xf32>, vector<32x32xf32>, vector<32x32xf32> -> vector<32x32xf32>
    %4 = arith.truncf %3 : vector<32x32xf32> to vector<32x32xbf16>
    %cst_5 = arith.constant dense<0.000000e+00> : vector<32x32xf32>
    %5 = tpu.matmul %1, %4, %cst_5 {dimension_numbers = #tpu.dot_dimension_numbers<[1], [0], [0], [1], [0, 0, 1, 1], [], []>} : vector<32x32xbf16>, vector<32x32xbf16>, vector<32x32xf32> -> vector<32x32xf32>
    %c0_6 = arith.constant 0 : index
    %c0_7 = arith.constant 0 : index
    %6 = vector.load %arg4[%c0_6, %c0_7] : memref<1x32xf32, #tpu.memory_space<vmem>>, vector<1x32xf32>
    %7 = vector.broadcast %6 : vector<1x32xf32> to vector<32x32xf32>
    %8 = arith.addf %5, %7 : vector<32x32xf32>
    %c0_8 = arith.constant 0 : index
    %c0_9 = arith.constant 0 : index
    %9 = vector.load %arg5[%c0_8, %c0_9] : memref<32x1xf32, #tpu.memory_space<vmem>>, vector<32x1xf32>
    %cst_10 = arith.constant dense<0.000000e+00> : vector<32x1xf32>
    %10 = tpu.matmul %0, %9, %cst_10 {dimension_numbers = #tpu.dot_dimension_numbers<[1], [0], [0], [1], [0, 0, 1, 1], [], []>} : vector<32x32xf32>, vector<32x1xf32>, vector<32x1xf32> -> vector<32x1xf32>
    %c0_11 = arith.constant 0 : index
    %c0_12 = arith.constant 0 : index
    %11 = vector.load %arg6[%c0_11, %c0_12] : memref<1x1xf32, #tpu.memory_space<vmem>>, vector<1x1xf32>
    %12 = vector.broadcast %11 : vector<1x1xf32> to vector<32x1xf32>
    %13 = arith.addf %10, %12 : vector<32x1xf32>
    %c0_13 = arith.constant 0 : index
    %c0_14 = arith.constant 0 : index
    %14 = vector.load %arg5[%c0_13, %c0_14] : memref<32x1xf32, #tpu.memory_space<vmem>>, vector<32x1xf32>
    %cst_15 = arith.constant dense<0.000000e+00> : vector<32x1xf32>
    %15 = tpu.matmul %8, %14, %cst_15 {dimension_numbers = #tpu.dot_dimension_numbers<[1], [0], [0], [1], [0, 0, 1, 1], [], []>} : vector<32x32xf32>, vector<32x1xf32>, vector<32x1xf32> -> vector<32x1xf32>
    %c0_16 = arith.constant 0 : index
    %c0_17 = arith.constant 0 : index
    %16 = vector.load %arg6[%c0_16, %c0_17] : memref<1x1xf32, #tpu.memory_space<vmem>>, vector<1x1xf32>
    %17 = vector.broadcast %16 : vector<1x1xf32> to vector<32x1xf32>
    %18 = arith.addf %15, %17 : vector<32x1xf32>
    %19 = arith.maximumf %13, %18 : vector<32x1xf32>
    %20 = arith.subf %13, %19 : vector<32x1xf32>
    %21 = math.exp %20 : vector<32x1xf32>
    %22 = arith.subf %18, %19 : vector<32x1xf32>
    %23 = math.exp %22 : vector<32x1xf32>
    %24 = arith.addf %21, %23 : vector<32x1xf32>
    %25 = tpu.reciprocal %24 {approx = true} : vector<32x1xf32> -> vector<32x1xf32>
    %26 = vector.broadcast %21 : vector<32x1xf32> to vector<32x32xf32>
    %27 = arith.mulf %26, %0 : vector<32x32xf32>
    %28 = vector.broadcast %23 : vector<32x1xf32> to vector<32x32xf32>
    %29 = arith.mulf %28, %8 : vector<32x32xf32>
    %30 = arith.addf %27, %29 : vector<32x32xf32>
    %31 = vector.broadcast %25 : vector<32x1xf32> to vector<32x32xf32>
    %32 = arith.mulf %30, %31 : vector<32x32xf32>
    %c0_18 = arith.constant 0 : index
    %c0_19 = arith.constant 0 : index
    %33 = vector.load %arg7[%c0_18, %c0_19] : memref<32x32xf32, #tpu.memory_space<vmem>>, vector<32x32xf32>
    tpu.vector_store %arg7[%c0_18, %c0_19], %32 {strides = array<i32>} : memref<32x32xf32, #tpu.memory_space<vmem>>, vector<32x32xf32>,
    return
  }
  func.func @transform_0(%arg0: i32) -> (i32, i32) {
    %c0_i32 = arith.constant 0 : i32
    %c0_i32_0 = arith.constant 0 : i32
    %c0_i32_1 = arith.constant 0 : i32
    return %c0_i32, %c0_i32_0 : i32, i32
  }
  func.func @transform_1(%arg0: i32) -> (i32, i32) {
    %c0_i32 = arith.constant 0 : i32
    %c0_i32_0 = arith.constant 0 : i32
    %c0_i32_1 = arith.constant 0 : i32
    return %c0_i32, %c0_i32_0 : i32, i32
  }
  func.func @transform_2(%arg0: i32) -> (i32, i32) {
    %c0_i32 = arith.constant 0 : i32
    %c0_i32_0 = arith.constant 0 : i32
    %c0_i32_1 = arith.constant 0 : i32
    return %c0_i32, %c0_i32_0 : i32, i32
  }
  func.func @transform_3(%arg0: i32) -> (i32, i32) {
    %c0_i32 = arith.constant 0 : i32
    %c0_i32_0 = arith.constant 0 : i32
    %c0_i32_1 = arith.constant 0 : i32
    return %c0_i32, %c0_i32_0 : i32, i32
  }
  func.func @transform_4(%arg0: i32) -> (i32, i32) {
    %c0_i32 = arith.constant 0 : i32
    %c0_i32_0 = arith.constant 0 : i32
    %c0_i32_1 = arith.constant 0 : i32
    return %c0_i32, %c0_i32_0 : i32, i32
  }
  func.func @transform_5(%arg0: i32) -> (i32, i32) {
    %c0_i32 = arith.constant 0 : i32
    %c0_i32_0 = arith.constant 0 : i32
    %c0_i32_1 = arith.constant 0 : i32
    return %c0_i32, %c0_i32_0 : i32, i32
  }
  func.func @transform_6(%arg0: i32) -> (i32, i32) {
    %c0_i32 = arith.constant 0 : i32
    %c0_i32_0 = arith.constant 0 : i32
    %c0_i32_1 = arith.constant 0 : i32
    return %c0_i32, %c0_i32_0 : i32, i32
  }
}

module attributes {stable_mosaic.version = 11 : i64} {
  func.func @kernel(%arg0: i32, %arg1: memref<48x32xf32, #tpu.memory_space<vmem>>, %arg2: memref<48x2xf32, #tpu.memory_space<vmem>>, %arg3: memref<32x33xf32, #tpu.memory_space<vmem>>, %arg4: memref<1x33xf32, #tpu.memory_space<vmem>>, %arg5: memref<32x2xf32, #tpu.memory_space<vmem>>, %arg6: memref<1x2xf32, #tpu.memory_space<vmem>>, %arg7: memref<3x2xf32, #tpu.memory_space<vmem>>) attributes {dimension_semantics = [#tpu.dimension_semantics<arbitrary>], iteration_bounds = array<i64: 1>, scalar_prefetch = 0 : i64, scratch_operands = 0 : i64, tpu.core_type = #tpu.core_type<tc>, window_params = [{pipeline_mode = #tpu.pipeline_mode<synchronous>, transform_indices = @transform_0, window_bounds = array<i64: 48, 32>}, {pipeline_mode = #tpu.pipeline_mode<synchronous>, transform_indices = @transform_1, window_bounds = array<i64: 48, 2>}, {pipeline_mode = #tpu.pipeline_mode<synchronous>, transform_indices = @transform_2, window_bounds = array<i64: 32, 33>}, {pipeline_mode = #tpu.pipeline_mode<synchronous>, transform_indices = @transform_3, window_bounds = array<i64: 1, 33>}, {pipeline_mode = #tpu.pipeline_mode<synchronous>, transform_indices = @transform_4, window_bounds = array<i64: 32, 2>}, {pipeline_mode = #tpu.pipeline_mode<synchronous>, transform_indices = @transform_5, window_bounds = array<i64: 1, 2>}, {pipeline_mode = #tpu.pipeline_mode<synchronous>, transform_indices = @transform_6, window_bounds = array<i64: 3, 2>}]} {
    %c0 = arith.constant 0 : index
    %c0_0 = arith.constant 0 : index
    %0 = vector.load %arg1[%c0, %c0_0] : memref<48x32xf32, #tpu.memory_space<vmem>>, vector<48x32xf32>
    %c0_1 = arith.constant 0 : index
    %c0_2 = arith.constant 0 : index
    %1 = vector.load %arg2[%c0_1, %c0_2] : memref<48x2xf32, #tpu.memory_space<vmem>>, vector<48x2xf32>
    %c0_3 = arith.constant 0 : index
    %c0_4 = arith.constant 0 : index
    %2 = vector.load %arg3[%c0_3, %c0_4] : memref<32x33xf32, #tpu.memory_space<vmem>>, vector<32x33xf32>
    %cst = arith.constant dense<0.000000e+00> : vector<48x33xf32>
    %3 = tpu.matmul %0, %2, %cst {dimension_numbers = #tpu.dot_dimension_numbers<[1], [0], [0], [1], [0, 0, 1, 1], [], []>} : vector<48x32xf32>, vector<32x33xf32>, vector<48x33xf32> -> vector<48x33xf32>
    %c0_5 = arith.constant 0 : index
    %c0_6 = arith.constant 0 : index
    %4 = vector.load %arg4[%c0_5, %c0_6] : memref<1x33xf32, #tpu.memory_space<vmem>>, vector<1x33xf32>
    %5 = vector.broadcast %4 : vector<1x33xf32> to vector<48x33xf32>
    %6 = arith.addf %3, %5 : vector<48x33xf32>
    %7 = vector.extract_strided_slice %6 {offsets = [0, 0], sizes = [48, 32], strides = [1, 1]} : vector<48x33xf32> to vector<48x32xf32>
    %cst_7 = arith.constant 0.000000e+00 : f32
    %8 = vector.broadcast %cst_7 : f32 to vector<48x32xf32>
    %9 = arith.maximumf %7, %8 : vector<48x32xf32>
    %10 = vector.extract_strided_slice %6 {offsets = [0, 32], sizes = [48, 1], strides = [1, 1]} : vector<48x33xf32> to vector<48x1xf32>
    %cst_8 = arith.constant 0.000000e+00 : f32
    %11 = vector.broadcast %cst_8 : f32 to vector<48x1xf32>
    %12 = arith.subf %11, %10 : vector<48x1xf32>
    %13 = math.exp %12 : vector<48x1xf32>
    %cst_9 = arith.constant 1.000000e+00 : f32
    %14 = vector.broadcast %cst_9 : f32 to vector<48x1xf32>
    %15 = arith.addf %14, %13 : vector<48x1xf32>
    %cst_10 = arith.constant 1.000000e+00 : f32
    %16 = vector.broadcast %cst_10 : f32 to vector<48x1xf32>
    %17 = arith.divf %16, %15 : vector<48x1xf32>
    %c0_11 = arith.constant 0 : index
    %c0_12 = arith.constant 0 : index
    %18 = vector.load %arg5[%c0_11, %c0_12] : memref<32x2xf32, #tpu.memory_space<vmem>>, vector<32x2xf32>
    %cst_13 = arith.constant dense<0.000000e+00> : vector<48x2xf32>
    %19 = tpu.matmul %9, %18, %cst_13 {dimension_numbers = #tpu.dot_dimension_numbers<[1], [0], [0], [1], [0, 0, 1, 1], [], []>} : vector<48x32xf32>, vector<32x2xf32>, vector<48x2xf32> -> vector<48x2xf32>
    %c0_14 = arith.constant 0 : index
    %c0_15 = arith.constant 0 : index
    %20 = vector.load %arg6[%c0_14, %c0_15] : memref<1x2xf32, #tpu.memory_space<vmem>>, vector<1x2xf32>
    %21 = vector.broadcast %20 : vector<1x2xf32> to vector<48x2xf32>
    %22 = arith.addf %19, %21 : vector<48x2xf32>
    %cst_16 = arith.constant dense<0xFF800000> : vector<48xf32>
    %23 = vector.multi_reduction <maximumf>, %22, %cst_16 [1] : vector<48x2xf32> to vector<48xf32>
    %24 = vector.shape_cast %23 : vector<48xf32> to vector<48x1xf32>
    %25 = vector.broadcast %24 : vector<48x1xf32> to vector<48x2xf32>
    %26 = arith.subf %22, %25 : vector<48x2xf32>
    %27 = math.exp %26 : vector<48x2xf32>
    %cst_17 = arith.constant dense<0.000000e+00> : vector<48xf32>
    %28 = vector.multi_reduction <add>, %27, %cst_17 [1] : vector<48x2xf32> to vector<48xf32>
    %29 = vector.shape_cast %28 : vector<48xf32> to vector<48x1xf32>
    %30 = math.log %29 : vector<48x1xf32>
    %31 = arith.addf %24, %30 : vector<48x1xf32>
    %32 = arith.mulf %22, %1 : vector<48x2xf32>
    %cst_18 = arith.constant dense<0.000000e+00> : vector<48xf32>
    %33 = vector.multi_reduction <add>, %32, %cst_18 [1] : vector<48x2xf32> to vector<48xf32>
    %34 = vector.shape_cast %33 : vector<48xf32> to vector<48x1xf32>
    %35 = arith.subf %31, %34 : vector<48x1xf32>
    %36 = tpu.concatenate %17, %35 in 1 : vector<48x1xf32>, vector<48x1xf32> -> vector<48x2xf32>
    %37 = tpu.iota {dimensions = array<i32: 1>} : vector<1x48xi32>
    %c0_i32 = arith.constant 0 : i32
    %38 = vector.broadcast %c0_i32 : i32 to vector<1x48xi32>
    %39 = arith.cmpi sge, %37, %38 : vector<1x48xi32>
    %c16_i32 = arith.constant 16 : i32
    %40 = vector.broadcast %c16_i32 : i32 to vector<1x48xi32>
    %41 = arith.cmpi slt, %37, %40 : vector<1x48xi32>
    %42 = arith.andi %39, %41 : vector<1x48xi1>
    %43 = arith.extui %42 : vector<1x48xi1> to vector<1x48xi32>
    %44 = arith.sitofp %43 : vector<1x48xi32> to vector<1x48xf32>
    %cst_19 = arith.constant 6.250000e-02 : f32
    %45 = vector.broadcast %cst_19 : f32 to vector<1x48xf32>
    %46 = arith.mulf %44, %45 : vector<1x48xf32>
    %c16_i32_20 = arith.constant 16 : i32
    %47 = vector.broadcast %c16_i32_20 : i32 to vector<1x48xi32>
    %48 = arith.cmpi sge, %37, %47 : vector<1x48xi32>
    %c32_i32 = arith.constant 32 : i32
    %49 = vector.broadcast %c32_i32 : i32 to vector<1x48xi32>
    %50 = arith.cmpi slt, %37, %49 : vector<1x48xi32>
    %51 = arith.andi %48, %50 : vector<1x48xi1>
    %52 = arith.extui %51 : vector<1x48xi1> to vector<1x48xi32>
    %53 = arith.sitofp %52 : vector<1x48xi32> to vector<1x48xf32>
    %cst_21 = arith.constant 6.250000e-02 : f32
    %54 = vector.broadcast %cst_21 : f32 to vector<1x48xf32>
    %55 = arith.mulf %53, %54 : vector<1x48xf32>
    %c32_i32_22 = arith.constant 32 : i32
    %56 = vector.broadcast %c32_i32_22 : i32 to vector<1x48xi32>
    %57 = arith.cmpi sge, %37, %56 : vector<1x48xi32>
    %c48_i32 = arith.constant 48 : i32
    %58 = vector.broadcast %c48_i32 : i32 to vector<1x48xi32>
    %59 = arith.cmpi slt, %37, %58 : vector<1x48xi32>
    %60 = arith.andi %57, %59 : vector<1x48xi1>
    %61 = arith.extui %60 : vector<1x48xi1> to vector<1x48xi32>
    %62 = arith.sitofp %61 : vector<1x48xi32> to vector<1x48xf32>
    %cst_23 = arith.constant 6.250000e-02 : f32
    %63 = vector.broadcast %cst_23 : f32 to vector<1x48xf32>
    %64 = arith.mulf %62, %63 : vector<1x48xf32>
    %65 = tpu.concatenate %46, %55, %64 in 0 : vector<1x48xf32>, vector<1x48xf32>, vector<1x48xf32> -> vector<3x48xf32>
    %cst_24 = arith.constant dense<0.000000e+00> : vector<3x2xf32>
    %66 = tpu.matmul %65, %36, %cst_24 {dimension_numbers = #tpu.dot_dimension_numbers<[1], [0], [0], [1], [0, 0, 1, 1], [], []>} : vector<3x48xf32>, vector<48x2xf32>, vector<3x2xf32> -> vector<3x2xf32>
    %c0_25 = arith.constant 0 : index
    %c0_26 = arith.constant 0 : index
    %67 = vector.load %arg7[%c0_25, %c0_26] : memref<3x2xf32, #tpu.memory_space<vmem>>, vector<3x2xf32>
    tpu.vector_store %arg7[%c0_25, %c0_26], %66 {strides = array<i32>} : memref<3x2xf32, #tpu.memory_space<vmem>>, vector<3x2xf32>,
    return
  }
  func.func @transform_0(%arg0: i32) -> (i32, i32) {
    %c0_i32 = arith.constant 0 : i32
    %c0_i32_0 = arith.constant 0 : i32
    %c0_i32_1 = arith.constant 0 : i32
    return %c0_i32, %c0_i32_0 : i32, i32
  }
  func.func @transform_1(%arg0: i32) -> (i32, i32) {
    %c0_i32 = arith.constant 0 : i32
    %c0_i32_0 = arith.constant 0 : i32
    %c0_i32_1 = arith.constant 0 : i32
    return %c0_i32, %c0_i32_0 : i32, i32
  }
  func.func @transform_2(%arg0: i32) -> (i32, i32) {
    %c0_i32 = arith.constant 0 : i32
    %c0_i32_0 = arith.constant 0 : i32
    %c0_i32_1 = arith.constant 0 : i32
    return %c0_i32, %c0_i32_0 : i32, i32
  }
  func.func @transform_3(%arg0: i32) -> (i32, i32) {
    %c0_i32 = arith.constant 0 : i32
    %c0_i32_0 = arith.constant 0 : i32
    %c0_i32_1 = arith.constant 0 : i32
    return %c0_i32, %c0_i32_0 : i32, i32
  }
  func.func @transform_4(%arg0: i32) -> (i32, i32) {
    %c0_i32 = arith.constant 0 : i32
    %c0_i32_0 = arith.constant 0 : i32
    %c0_i32_1 = arith.constant 0 : i32
    return %c0_i32, %c0_i32_0 : i32, i32
  }
  func.func @transform_5(%arg0: i32) -> (i32, i32) {
    %c0_i32 = arith.constant 0 : i32
    %c0_i32_0 = arith.constant 0 : i32
    %c0_i32_1 = arith.constant 0 : i32
    return %c0_i32, %c0_i32_0 : i32, i32
  }
  func.func @transform_6(%arg0: i32) -> (i32, i32) {
    %c0_i32 = arith.constant 0 : i32
    %c0_i32_0 = arith.constant 0 : i32
    %c0_i32_1 = arith.constant 0 : i32
    return %c0_i32, %c0_i32_0 : i32, i32
  }
}

module attributes {stable_mosaic.version = 11 : i64} {
  func.func @_cosine_kernel(%arg0: i32, %arg1: i32, %arg2: memref<32x16xf32, #tpu.memory_space<vmem>>, %arg3: memref<16x20xf32, #tpu.memory_space<vmem>>, %arg4: memref<32x20xf32, #tpu.memory_space<vmem>>) attributes {dimension_semantics = [#tpu.dimension_semantics<parallel>, #tpu.dimension_semantics<parallel>], iteration_bounds = array<i64: 1, 1>, scalar_prefetch = 0 : i64, scratch_operands = 0 : i64, tpu.core_type = #tpu.core_type<tc>, window_params = [{transform_indices = @transform_0, window_bounds = array<i64: 32, 16>}, {transform_indices = @transform_1, window_bounds = array<i64: 16, 20>}, {transform_indices = @transform_2, window_bounds = array<i64: 32, 20>}]} {
    %c0 = arith.constant 0 : index
    %c0_0 = arith.constant 0 : index
    %0 = vector.load %arg2[%c0, %c0_0] : memref<32x16xf32, #tpu.memory_space<vmem>>, vector<32x16xf32>
    %c0_1 = arith.constant 0 : index
    %c0_2 = arith.constant 0 : index
    %1 = vector.load %arg3[%c0_1, %c0_2] : memref<16x20xf32, #tpu.memory_space<vmem>>, vector<16x20xf32>
    %cst = arith.constant dense<0.000000e+00> : vector<32x20xf32>
    %2 = tpu.matmul %0, %1, %cst {dimension_numbers = #tpu.dot_dimension_numbers<[1], [0], [0], [1], [0, 0, 1, 1], [], []>} : vector<32x16xf32>, vector<16x20xf32>, vector<32x20xf32> -> vector<32x20xf32>
    %c0_3 = arith.constant 0 : index
    %c0_4 = arith.constant 0 : index
    %3 = vector.load %arg4[%c0_3, %c0_4] : memref<32x20xf32, #tpu.memory_space<vmem>>, vector<32x20xf32>
    tpu.vector_store %arg4[%c0_3, %c0_4], %2 {strides = array<i32>} : memref<32x20xf32, #tpu.memory_space<vmem>>, vector<32x20xf32>,
    return
  }
  func.func @transform_0(%arg0: i32, %arg1: i32) -> (i32, i32) {
    %c0_i32 = arith.constant 0 : i32
    %c0_i32_0 = arith.constant 0 : i32
    return %arg0, %c0_i32 : i32, i32
  }
  func.func @transform_1(%arg0: i32, %arg1: i32) -> (i32, i32) {
    %c0_i32 = arith.constant 0 : i32
    %c0_i32_0 = arith.constant 0 : i32
    return %c0_i32, %arg1 : i32, i32
  }
  func.func @transform_2(%arg0: i32, %arg1: i32) -> (i32, i32) {
    %c0_i32 = arith.constant 0 : i32
    return %arg0, %arg1 : i32, i32
  }
}

</mosaic_0001>

<llo_original>
// kernel: msgda_forward.5
$region0: #{msgda_forward.5}
  #allocation0 [shape = 'u32[]', space=smem, size = 0x4, offset = 0x4, fixed_abs, tag = 'smem constant byte address 0x4 - core index']
  #allocation1 [shape = 'u32[144,128]{1,0:T(1,128)}', space=vmem, size = 0x12000, scoped, tag = 'internal scratch']
  %s0 = inlined_call_operand.vmem [shape: f32[68,10], index: 0, kind: input, shape index: {}]
  %s1 = inlined_call_operand.vmem [shape: bf16[68,68], index: 1, kind: input, shape index: {}]
  %s2 = inlined_call_operand.vmem [shape: f32[10,32], index: 2, kind: input, shape index: {}]
  %s3 = inlined_call_operand.vmem [shape: f32[1,32], index: 3, kind: input, shape index: {}]
  %s4 = inlined_call_operand.vmem [shape: f32[32,32], index: 4, kind: input, shape index: {}]
  %s5 = inlined_call_operand.vmem [shape: f32[1,32], index: 5, kind: input, shape index: {}]
  %s6 = inlined_call_operand.vmem [shape: f32[32,32], index: 6, kind: input, shape index: {}]
  %s7 = inlined_call_operand.vmem [shape: f32[1,32], index: 7, kind: input, shape index: {}]
  %s8 = inlined_call_operand.vmem [shape: f32[68,32], index: 8, kind: output, shape index: {}]
  %s9 = sld [smem:[#allocation0]]
  $region42: #{msgda_forward.5} parent=0
    _
  %s11 = ssub.s32 1, %s9
  %s12 = scalar_select 0, %s11, %s9
  // Predicated region
  $region2: #{msgda_forward.5} parent=0 // pred_check
    _
  $region3: #{msgda_forward.5} parent=0 // pred_check_branch
    %14 = sbr.rel (0) target = $region5
  $region4: #{msgda_forward.5} parent=0 // pred_region
    _
  $region5: #{msgda_forward.5} parent=0 // pred_fallthru
    _
  // Predicated region
  $region6: #{msgda_forward.5} parent=0 // pred_check
    _
  $region7: #{msgda_forward.5} parent=0 // pred_check_branch
    %16 = sbr.rel (0) target = $region9
  $region8: #{msgda_forward.5} parent=0 // pred_region
    _
  $region9: #{msgda_forward.5} parent=0 // pred_fallthru
    _
  // Predicated region
  $region10: #{msgda_forward.5} parent=0 // pred_check
    _
  $region11: #{msgda_forward.5} parent=0 // pred_check_branch
    %18 = sbr.rel (0) target = $region13
  $region12: #{msgda_forward.5} parent=0 // pred_region
    _
  $region13: #{msgda_forward.5} parent=0 // pred_fallthru
    _
  // Predicated region
  $region14: #{msgda_forward.5} parent=0 // pred_check
    _
  $region15: #{msgda_forward.5} parent=0 // pred_check_branch
    %20 = sbr.rel (0) target = $region17
  $region16: #{msgda_forward.5} parent=0 // pred_region
    _
  $region17: #{msgda_forward.5} parent=0 // pred_fallthru
    _
  // Predicated region
  $region18: #{msgda_forward.5} parent=0 // pred_check
    _
  $region19: #{msgda_forward.5} parent=0 // pred_check_branch
    %22 = sbr.rel (0) target = $region21
  $region20: #{msgda_forward.5} parent=0 // pred_region
    _
  $region21: #{msgda_forward.5} parent=0 // pred_fallthru
    _
  // Predicated region
  $region22: #{msgda_forward.5} parent=0 // pred_check
    _
  $region23: #{msgda_forward.5} parent=0 // pred_check_branch
    %24 = sbr.rel (0) target = $region25
  $region24: #{msgda_forward.5} parent=0 // pred_region
    _
  $region25: #{msgda_forward.5} parent=0 // pred_fallthru
    _
  // Predicated region
  $region26: #{msgda_forward.5} parent=0 // pred_check
    _
  $region27: #{msgda_forward.5} parent=0 // pred_check_branch
    %26 = sbr.rel (0) target = $region29
  $region28: #{msgda_forward.5} parent=0 // pred_region
    _
  $region29: #{msgda_forward.5} parent=0 // pred_fallthru
    _
  // Predicated region
  $region30: #{msgda_forward.5} parent=0 // pred_check
    _
  $region31: #{msgda_forward.5} parent=0 // pred_check_branch
    %28 = sbr.rel (0) target = $region33
  $region32: #{msgda_forward.5} parent=0 // pred_region
    _
  $region33: #{msgda_forward.5} parent=0 // pred_fallthru
    _
  %v30 = vld [vmem:[%s0] sm:$0xff]
  %v31 = vld [vmem:[%s0 + $0x8] sm:$0xff]
  %v32 = vld [vmem:[%s0 + $0x10] sm:$0xff]
  %v33 = vld [vmem:[%s0 + $0x18] sm:$0xff]
  %v34 = vld [vmem:[%s0 + $0x20] sm:$0xff]
  %v35 = vld [vmem:[%s0 + $0x28] sm:$0xff]
  %v36 = vld [vmem:[%s0 + $0x30] sm:$0xff]
  %v37 = vld [vmem:[%s0 + $0x38] sm:$0xff]
  %v38 = vld [vmem:[%s0 + $0x40] sm:$0xf]
  %v39 = vld [vmem:[%s1] sm:$0xf]
  %v40 = vld [vmem:[%s1 + $0x4] sm:$0xf]
  %v41 = vld [vmem:[%s1 + $0x8] sm:$0xf]
  %v42 = vld [vmem:[%s1 + $0xc] sm:$0xf]
  %v43 = vld [vmem:[%s1 + $0x10] sm:$0xf]
  %v44 = vld [vmem:[%s1 + $0x14] sm:$0xf]
  %v45 = vld [vmem:[%s1 + $0x18] sm:$0xf]
  %v46 = vld [vmem:[%s1 + $0x1c] sm:$0xf]
  %v47 = vld [vmem:[%s1 + $0x20] sm:$0x3]
  %v48 = vld [vmem:[%s2] sm:$0xff]
  %v49 = vld [vmem:[%s2 + $0x8] sm:$0x3]
  %v50 = vld [vmem:[%s3] sm:$0x1]
  %v52 = vlaneseq
  %v53 = vshrl.u32 %v52, 7
  %v54 = vsub.s32 0, %v53
  %v55 = vrot.slane %v50, %v54
  %vm57 = vcmask 80896
  %v59 = vsel %vm57, %v30, 0
  %v62 = vsel %vm57, %v31, 0
  %v65 = vsel %vm57, %v32, 0
  %v68 = vsel %vm57, %v33, 0
  %v71 = vsel %vm57, %v34, 0
  %v74 = vsel %vm57, %v35, 0
  %v77 = vsel %vm57, %v36, 0
  %v80 = vsel %vm57, %v37, 0
  %v83 = vsel %vm57, %v38, 0
  %vm85 = vcmask 1041408
  %v87 = vsel %vm85, %v49, 0
  %89 = vmatprep.subr.mxu0 0.0
  %90 = vmatpush1.msra.mxu0 0.0
  %91 = vmatprep.subr.mxu0 0.0
  %92 = vmatpush1.msra.mxu0 0.0
  %93 = vmatprep.subr.mxu0 0.0
  %94 = vmatpush1.msra.mxu0 0.0
  %95 = vmatprep.subr.mxu0 0.0
  %96 = vmatpush1.msra.mxu0 0.0
  %97 = vmatprep.subr.mxu0 0.0
  %98 = vmatpush1.msra.mxu0 0.0
  %99 = vmatprep.subr.mxu0 0.0
  %100 = vmatpush1.msra.mxu0 0.0
  %101 = vmatprep.subr.mxu0 0.0
  %102 = vmatpush1.msra.mxu0 0.0
  %103 = vmatprep.subr.mxu0 0.0
  %104 = vmatpush1.msra.mxu0 0.0
  %105 = vmatprep.subr.mxu0 0.0
  %106 = vmatpush1.msra.mxu0 0.0
  %107 = vmatprep.subr.mxu0 0.0
  %108 = vmatpush1.msra.mxu0 0.0
  %109 = vmatprep.subr.mxu0 0.0
  %110 = vmatpush1.msra.mxu0 0.0
  %111 = vmatprep.subr.mxu0 0.0
  %112 = vmatpush1.msra.mxu0 0.0
  %113 = vmatprep.subr.mxu0 0.0
  %114 = vmatpush1.msra.mxu0 0.0
  %115 = vmatprep.subr.mxu0 0.0
  %116 = vmatpush1.msra.mxu0 0.0
  %117 = vmatprep.subr.mxu0 0.0
  %118 = vmatpush1.msra.mxu0 %v87
  %119 = vmatprep.subr.mxu0 0.0
  %120 = vmatpush1.msra.mxu0 %v48
  %121 = vmatprep.subr.mxu0 0.0
  %122 = vmatpush2.msra.mxu0 0.0
  %123 = vmatprep.subr.mxu0 0.0
  %124 = vmatpush2.msra.mxu0 0.0
  %125 = vmatprep.subr.mxu0 0.0
  %126 = vmatpush2.msra.mxu0 0.0
  %127 = vmatprep.subr.mxu0 0.0
  %128 = vmatpush2.msra.mxu0 0.0
  %129 = vmatprep.subr.mxu0 0.0
  %130 = vmatpush2.msra.mxu0 0.0
  %131 = vmatprep.subr.mxu0 0.0
  %132 = vmatpush2.msra.mxu0 0.0
  %133 = vmatprep.subr.mxu0 0.0
  %134 = vmatpush2.msra.mxu0 0.0
  %135 = vmatprep.subr.mxu0 0.0
  %136 = vmatpush2.msra.mxu0 0.0
  %137 = vmatprep.subr.mxu0 0.0
  %138 = vmatpush2.msra.mxu0 0.0
  %139 = vmatprep.subr.mxu0 0.0
  %140 = vmatpush2.msra.mxu0 0.0
  %141 = vmatprep.subr.mxu0 0.0
  %142 = vmatpush2.msra.mxu0 0.0
  %143 = vmatprep.subr.mxu0 0.0
  %144 = vmatpush2.msra.mxu0 0.0
  %145 = vmatprep.subr.mxu0 0.0
  %146 = vmatpush2.msra.mxu0 0.0
  %147 = vmatprep.subr.mxu0 0.0
  %148 = vmatpush2.msra.mxu0 0.0
  %149 = vmatprep.subr.mxu0 0.0
  %150 = vmatpush2.msra.mxu0 0.0
  %151 = vmatprep.subr.mxu0 0.0
  %152 = vmatpush2.msra.mxu0 0.0
  %153 = vmatprep.mubr.f32.mxu0 0.0
  %154 = vmatmul.mubr.f32.gmra.mxu0 %v59
  %v155 = vpop.f32.mrf.mxu0
  %v156 = vadd.f32 %v55, %v155
  %v157 = vpop.f32.mrf.mxu0
  %158 = vmatprep.mubr.f32.mxu0 0.0
  %159 = vmatmul.mubr.f32.gmra.mxu0 %v62
  %v160 = vpop.f32.mrf.mxu0
  %v161 = vadd.f32 %v55, %v160
  %v162 = vpop.f32.mrf.mxu0
  %163 = vmatprep.mubr.f32.mxu0 0.0
  %164 = vmatmul.mubr.f32.gmra.mxu0 %v65
  %v165 = vpop.f32.mrf.mxu0
  %v166 = vadd.f32 %v55, %v165
  %v167 = vpop.f32.mrf.mxu0
  %168 = vmatprep.mubr.f32.mxu0 0.0
  %169 = vmatmul.mubr.f32.gmra.mxu0 %v68
  %v170 = vpop.f32.mrf.mxu0
  %v171 = vadd.f32 %v55, %v170
  %v172 = vpop.f32.mrf.mxu0
  %173 = vmatprep.mubr.f32.mxu0 0.0
  %174 = vmatmul.mubr.f32.gmra.mxu0 %v71
  %v175 = vpop.f32.mrf.mxu0
  %v176 = vadd.f32 %v55, %v175
  %v177 = vpop.f32.mrf.mxu0
  %178 = vmatprep.mubr.f32.mxu0 0.0
  %179 = vmatmul.mubr.f32.gmra.mxu0 %v74
  %v180 = vpop.f32.mrf.mxu0
  %v181 = vadd.f32 %v55, %v180
  %v182 = vpop.f32.mrf.mxu0
  %183 = vmatprep.mubr.f32.mxu0 0.0
  %184 = vmatmul.mubr.f32.gmra.mxu0 %v77
  %v185 = vpop.f32.mrf.mxu0
  %v186 = vadd.f32 %v55, %v185
  %v187 = vpop.f32.mrf.mxu0
  %188 = vmatprep.mubr.f32.mxu0 0.0
  %189 = vmatmul.mubr.f32.gmra.mxu0 %v80
  %v190 = vpop.f32.mrf.mxu0
  %v191 = vadd.f32 %v55, %v190
  %v192 = vpop.f32.mrf.mxu0
  %193 = vmatprep.mubr.f32.mxu0 0.0
  %194 = vmatmul.mubr.f32.gmra.mxu0 %v83
  %v195 = vpop.f32.mrf.mxu0
  %v196 = vadd.f32 %v55, %v195
  %v197 = vpop.f32.mrf.mxu0
  %198 = vdwg.mxu0
  %v199 = vmax.f32 %v156, 0.0
  %v200 = vmax.f32 %v161, 0.0
  %v201 = vmax.f32 %v166, 0.0
  %v202 = vmax.f32 %v171, 0.0
  %v203 = vmax.f32 %v176, 0.0
  %v204 = vmax.f32 %v181, 0.0
  %v205 = vmax.f32 %v186, 0.0
  %v206 = vmax.f32 %v191, 0.0
  %v207 = vmax.f32 %v196, 0.0
  %v208 = vmul.f32 %v199, 0.999995
  %v209 = vmul.f32 %v200, 0.999995
  %v210 = vmul.f32 %v201, 0.999995
  %v211 = vmul.f32 %v202, 0.999995
  %v212 = vmul.f32 %v203, 0.999995
  %v213 = vmul.f32 %v204, 0.999995
  %v214 = vmul.f32 %v205, 0.999995
  %v215 = vmul.f32 %v206, 0.999995
  %v216 = vmul.f32 %v207, 0.999995
  %v217 = vld [vmem:[%s4] sm:$0xff]
  %v218 = vld [vmem:[%s4 + $0x8] sm:$0xff]
  %v219 = vld [vmem:[%s4 + $0x10] sm:$0xff]
  %v220 = vld [vmem:[%s4 + $0x18] sm:$0xff]
  %vm221 = vcmask 261120
  %v223 = vsel %vm221, %v208, 0
  %v226 = vsel %vm221, %v209, 0
  %v229 = vsel %vm221, %v210, 0
  %v232 = vsel %vm221, %v211, 0
  %v235 = vsel %vm221, %v212, 0
  %v238 = vsel %vm221, %v213, 0
  %v241 = vsel %vm221, %v214, 0
  %v244 = vsel %vm221, %v215, 0
  %v247 = vsel %vm221, %v216, 0
  %249 = vmatprep.subr.mxu0 0.0
  %250 = vmatpush1.msra.mxu0 0.0
  %251 = vmatprep.subr.mxu0 0.0
  %252 = vmatpush1.msra.mxu0 0.0
  %253 = vmatprep.subr.mxu0 0.0
  %254 = vmatpush1.msra.mxu0 0.0
  %255 = vmatprep.subr.mxu0 0.0
  %256 = vmatpush1.msra.mxu0 0.0
  %257 = vmatprep.subr.mxu0 0.0
  %258 = vmatpush1.msra.mxu0 0.0
  %259 = vmatprep.subr.mxu0 0.0
  %260 = vmatpush1.msra.mxu0 0.0
  %261 = vmatprep.subr.mxu0 0.0
  %262 = vmatpush1.msra.mxu0 0.0
  %263 = vmatprep.subr.mxu0 0.0
  %264 = vmatpush1.msra.mxu0 0.0
  %265 = vmatprep.subr.mxu0 0.0
  %266 = vmatpush1.msra.mxu0 0.0
  %267 = vmatprep.subr.mxu0 0.0
  %268 = vmatpush1.msra.mxu0 0.0
  %269 = vmatprep.subr.mxu0 0.0
  %270 = vmatpush1.msra.mxu0 0.0
  %271 = vmatprep.subr.mxu0 0.0
  %272 = vmatpush1.msra.mxu0 0.0
  %273 = vmatprep.subr.mxu0 0.0
  %274 = vmatpush1.msra.mxu0 %v220
  %275 = vmatprep.subr.mxu0 0.0
  %276 = vmatpush1.msra.mxu0 %v219
  %277 = vmatprep.subr.mxu0 0.0
  %278 = vmatpush1.msra.mxu0 %v218
  %279 = vmatprep.subr.mxu0 0.0
  %280 = vmatpush1.msra.mxu0 %v217
  %281 = vmatprep.subr.mxu0 0.0
  %282 = vmatpush2.msra.mxu0 0.0
  %283 = vmatprep.subr.mxu0 0.0
  %284 = vmatpush2.msra.mxu0 0.0
  %285 = vmatprep.subr.mxu0 0.0
  %286 = vmatpush2.msra.mxu0 0.0
  %287 = vmatprep.subr.mxu0 0.0
  %288 = vmatpush2.msra.mxu0 0.0
  %289 = vmatprep.subr.mxu0 0.0
  %290 = vmatpush2.msra.mxu0 0.0
  %291 = vmatprep.subr.mxu0 0.0
  %292 = vmatpush2.msra.mxu0 0.0
  %293 = vmatprep.subr.mxu0 0.0
  %294 = vmatpush2.msra.mxu0 0.0
  %295 = vmatprep.subr.mxu0 0.0
  %296 = vmatpush2.msra.mxu0 0.0
  %297 = vmatprep.subr.mxu0 0.0
  %298 = vmatpush2.msra.mxu0 0.0
  %299 = vmatprep.subr.mxu0 0.0
  %300 = vmatpush2.msra.mxu0 0.0
  %301 = vmatprep.subr.mxu0 0.0
  %302 = vmatpush2.msra.mxu0 0.0
  %303 = vmatprep.subr.mxu0 0.0
  %304 = vmatpush2.msra.mxu0 0.0
  %305 = vmatprep.subr.mxu0 0.0
  %306 = vmatpush2.msra.mxu0 0.0
  %307 = vmatprep.subr.mxu0 0.0
  %308 = vmatpush2.msra.mxu0 0.0
  %309 = vmatprep.subr.mxu0 0.0
  %310 = vmatpush2.msra.mxu0 0.0
  %311 = vmatprep.subr.mxu0 0.0
  %312 = vmatpush2.msra.mxu0 0.0
  %313 = vmatprep.mubr.f32.mxu0 0.0
  %314 = vmatmul.mubr.f32.gmra.mxu0 %v223
  %v315 = vpop.f32.mrf.mxu0
  %v316 = vadd.f32 0.0, %v315
  %v317 = vpop.f32.mrf.mxu0
  %318 = vmatprep.mubr.f32.mxu0 0.0
  %319 = vmatmul.mubr.f32.gmra.mxu0 %v226
  %v320 = vpop.f32.mrf.mxu0
  %v321 = vadd.f32 0.0, %v320
  %v322 = vpop.f32.mrf.mxu0
  %323 = vmatprep.mubr.f32.mxu0 0.0
  %324 = vmatmul.mubr.f32.gmra.mxu0 %v229
  %v325 = vpop.f32.mrf.mxu0
  %v326 = vadd.f32 0.0, %v325
  %v327 = vpop.f32.mrf.mxu0
  %328 = vmatprep.mubr.f32.mxu0 0.0
  %329 = vmatmul.mubr.f32.gmra.mxu0 %v232
  %v330 = vpop.f32.mrf.mxu0
  %v331 = vadd.f32 0.0, %v330
  %v332 = vpop.f32.mrf.mxu0
  %333 = vmatprep.mubr.f32.mxu0 0.0
  %334 = vmatmul.mubr.f32.gmra.mxu0 %v235
  %v335 = vpop.f32.mrf.mxu0
  %v336 = vadd.f32 0.0, %v335
  %v337 = vpop.f32.mrf.mxu0
  %338 = vmatprep.mubr.f32.mxu0 0.0
  %339 = vmatmul.mubr.f32.gmra.mxu0 %v238
  %v340 = vpop.f32.mrf.mxu0
  %v341 = vadd.f32 0.0, %v340
  %v342 = vpop.f32.mrf.mxu0
  %343 = vmatprep.mubr.f32.mxu0 0.0
  %344 = vmatmul.mubr.f32.gmra.mxu0 %v241
  %v345 = vpop.f32.mrf.mxu0
  %v346 = vadd.f32 0.0, %v345
  %v347 = vpop.f32.mrf.mxu0
  %348 = vmatprep.mubr.f32.mxu0 0.0
  %349 = vmatmul.mubr.f32.gmra.mxu0 %v244
  %v350 = vpop.f32.mrf.mxu0
  %v351 = vadd.f32 0.0, %v350
  %v352 = vpop.f32.mrf.mxu0
  %353 = vmatprep.mubr.f32.mxu0 0.0
  %354 = vmatmul.mubr.f32.gmra.mxu0 %v247
  %v355 = vpop.f32.mrf.mxu0
  %v356 = vadd.f32 0.0, %v355
  %v357 = vpop.f32.mrf.mxu0
  %358 = vdwg.mxu0
  %v359 = vpack.c.bf16 %v321, %v316
  %v360 = vpack.c.bf16 %v331, %v326
  %v361 = vpack.c.bf16 %v341, %v336
  %v362 = vpack.c.bf16 %v351, %v346
  %v363 = vpack.c.bf16 %v356, %v356
  %v364 = vld [vmem:[%s5] sm:$0x1]
  %v366 = vlaneseq
  %v367 = vshrl.u32 %v366, 7
  %v368 = vsub.s32 0, %v367
  %v369 = vrot.slane %v364, %v368
  %v380 = vunpack.c.l.b16 %v39
  %v381 = vunpack.c.l.b16 %v40
  %v382 = vunpack.c.l.b16 %v41
  %v383 = vunpack.c.l.b16 %v42
  %v384 = vunpack.c.l.b16 %v43
  %v385 = vunpack.c.l.b16 %v44
  %v386 = vunpack.c.l.b16 %v45
  %v387 = vunpack.c.l.b16 %v46
  %v388 = vunpack.c.l.b16 %v47
  %v389 = vpack.c.b16 %v381, %v380
  %v390 = vpack.c.b16 %v383, %v382
  %v391 = vpack.c.b16 %v385, %v384
  %v392 = vpack.c.b16 %v387, %v386
  %v393 = vpack.c.b16 %v388, %v388
  %vm394 = vcmask 556032
  %v396 = vsel %vm394, %v389, 0
  %v399 = vsel %vm394, %v390, 0
  %v402 = vsel %vm394, %v391, 0
  %v405 = vsel %vm394, %v392, 0
  %v408 = vsel %vm394, %v393, 0
  %v411 = vsel %vm85, %v363, 0
  %413 = vmatprep.subr.bf16.mxu0 0
  %414 = vmatpush1.bf16.msra.mxu0 0
  %415 = vmatprep.subr.bf16.mxu0 0
  %416 = vmatpush1.bf16.msra.mxu0 0
  %417 = vmatprep.subr.bf16.mxu0 0
  %418 = vmatpush1.bf16.msra.mxu0 0
  %419 = vmatprep.subr.bf16.mxu0 0
  %420 = vmatpush1.bf16.msra.mxu0 %v411
  %421 = vmatprep.subr.bf16.mxu0 0
  %422 = vmatpush1.bf16.msra.mxu0 %v362
  %423 = vmatprep.subr.bf16.mxu0 0
  %424 = vmatpush1.bf16.msra.mxu0 %v361
  %425 = vmatprep.subr.bf16.mxu0 0
  %426 = vmatpush1.bf16.msra.mxu0 %v360
  %427 = vmatprep.subr.bf16.mxu0 0
  %428 = vmatpush1.bf16.msra.mxu0 %v359
  %429 = vmatprep.subr.bf16.mxu0 0
  %430 = vmatpush2.bf16.msra.mxu0 0
  %431 = vmatprep.subr.bf16.mxu0 0
  %432 = vmatpush2.bf16.msra.mxu0 0
  %433 = vmatprep.subr.bf16.mxu0 0
  %434 = vmatpush2.bf16.msra.mxu0 0
  %435 = vmatprep.subr.bf16.mxu0 0
  %436 = vmatpush2.bf16.msra.mxu0 0
  %437 = vmatprep.subr.bf16.mxu0 0
  %438 = vmatpush2.bf16.msra.mxu0 0
  %439 = vmatprep.subr.bf16.mxu0 0
  %440 = vmatpush2.bf16.msra.mxu0 0
  %441 = vmatprep.subr.bf16.mxu0 0
  %442 = vmatpush2.bf16.msra.mxu0 0
  %443 = vmatprep.subr.bf16.mxu0 0
  %444 = vmatpush2.bf16.msra.mxu0 0
  %445 = vmatprep.mubr.bf16.mxu0 0
  %446 = vmatmul.mubr.bf16.gmra.mxu0 %v396
  %v447 = vpop.f32.mrf.mxu0
  %v448 = vadd.f32 %v369, %v447
  %v449 = vpop.f32.mrf.mxu0
  %v450 = vpop.f32.mrf.mxu0
  %v451 = vadd.f32 %v369, %v450
  %v452 = vpop.f32.mrf.mxu0
  %453 = vmatprep.mubr.bf16.mxu0 0
  %454 = vmatmul.mubr.bf16.gmra.mxu0 %v399
  %v455 = vpop.f32.mrf.mxu0
  %v456 = vadd.f32 %v369, %v455
  %v457 = vpop.f32.mrf.mxu0
  %v458 = vpop.f32.mrf.mxu0
  %v459 = vadd.f32 %v369, %v458
  %v460 = vpop.f32.mrf.mxu0
  %461 = vmatprep.mubr.bf16.mxu0 0
  %462 = vmatmul.mubr.bf16.gmra.mxu0 %v402
  %v463 = vpop.f32.mrf.mxu0
  %v464 = vadd.f32 %v369, %v463
  %v465 = vpop.f32.mrf.mxu0
  %v466 = vpop.f32.mrf.mxu0
  %v467 = vadd.f32 %v369, %v466
  %v468 = vpop.f32.mrf.mxu0
  %469 = vmatprep.mubr.bf16.mxu0 0
  %470 = vmatmul.mubr.bf16.gmra.mxu0 %v405
  %v471 = vpop.f32.mrf.mxu0
  %v472 = vadd.f32 %v369, %v471
  %v473 = vpop.f32.mrf.mxu0
  %v474 = vpop.f32.mrf.mxu0
  %v475 = vadd.f32 %v369, %v474
  %v476 = vpop.f32.mrf.mxu0
  %477 = vmatprep.mubr.bf16.mxu0 0
  %478 = vmatmul.mubr.bf16.gmra.mxu0 %v408
  %v479 = vpop.f32.mrf.mxu0
  %v480 = vadd.f32 %v369, %v479
  %v481 = vpop.f32.mrf.mxu0
  %v482 = vpop.f32.mrf.mxu0
  %v483 = vpop.f32.mrf.mxu0
  %484 = vdwg.mxu0
  %v485 = vmax.f32 %v448, 0.0
  %v486 = vmax.f32 %v451, 0.0
  %v487 = vmax.f32 %v456, 0.0
  %v488 = vmax.f32 %v459, 0.0
  %v489 = vmax.f32 %v464, 0.0
  %v490 = vmax.f32 %v467, 0.0
  %v491 = vmax.f32 %v472, 0.0
  %v492 = vmax.f32 %v475, 0.0
  %v493 = vmax.f32 %v480, 0.0
  %v494 = vld [vmem:[%s6] sm:$0xff]
  %v495 = vld [vmem:[%s6 + $0x8] sm:$0xff]
  %v496 = vld [vmem:[%s6 + $0x10] sm:$0xff]
  %v497 = vld [vmem:[%s6 + $0x18] sm:$0xff]
  %v499 = vsel %vm221, %v485, 0
  %v502 = vsel %vm221, %v486, 0
  %v505 = vsel %vm221, %v487, 0
  %v508 = vsel %vm221, %v488, 0
  %v511 = vsel %vm221, %v489, 0
  %v514 = vsel %vm221, %v490, 0
  %v517 = vsel %vm221, %v491, 0
  %v520 = vsel %vm221, %v492, 0
  %v523 = vsel %vm221, %v493, 0
  %525 = vmatprep.subr.mxu0 0.0
  %526 = vmatpush1.msra.mxu0 0.0
  %527 = vmatprep.subr.mxu0 0.0
  %528 = vmatpush1.msra.mxu0 0.0
  %529 = vmatprep.subr.mxu0 0.0
  %530 = vmatpush1.msra.mxu0 0.0
  %531 = vmatprep.subr.mxu0 0.0
  %532 = vmatpush1.msra.mxu0 0.0
  %533 = vmatprep.subr.mxu0 0.0
  %534 = vmatpush1.msra.mxu0 0.0
  %535 = vmatprep.subr.mxu0 0.0
  %536 = vmatpush1.msra.mxu0 0.0
  %537 = vmatprep.subr.mxu0 0.0
  %538 = vmatpush1.msra.mxu0 0.0
  %539 = vmatprep.subr.mxu0 0.0
  %540 = vmatpush1.msra.mxu0 0.0
  %541 = vmatprep.subr.mxu0 0.0
  %542 = vmatpush1.msra.mxu0 0.0
  %543 = vmatprep.subr.mxu0 0.0
  %544 = vmatpush1.msra.mxu0 0.0
  %545 = vmatprep.subr.mxu0 0.0
  %546 = vmatpush1.msra.mxu0 0.0
  %547 = vmatprep.subr.mxu0 0.0
  %548 = vmatpush1.msra.mxu0 0.0
  %549 = vmatprep.subr.mxu0 0.0
  %550 = vmatpush1.msra.mxu0 %v497
  %551 = vmatprep.subr.mxu0 0.0
  %552 = vmatpush1.msra.mxu0 %v496
  %553 = vmatprep.subr.mxu0 0.0
  %554 = vmatpush1.msra.mxu0 %v495
  %555 = vmatprep.subr.mxu0 0.0
  %556 = vmatpush1.msra.mxu0 %v494
  %557 = vmatprep.subr.mxu0 0.0
  %558 = vmatpush2.msra.mxu0 0.0
  %559 = vmatprep.subr.mxu0 0.0
  %560 = vmatpush2.msra.mxu0 0.0
  %561 = vmatprep.subr.mxu0 0.0
  %562 = vmatpush2.msra.mxu0 0.0
  %563 = vmatprep.subr.mxu0 0.0
  %564 = vmatpush2.msra.mxu0 0.0
  %565 = vmatprep.subr.mxu0 0.0
  %566 = vmatpush2.msra.mxu0 0.0
  %567 = vmatprep.subr.mxu0 0.0
  %568 = vmatpush2.msra.mxu0 0.0
  %569 = vmatprep.subr.mxu0 0.0
  %570 = vmatpush2.msra.mxu0 0.0
  %571 = vmatprep.subr.mxu0 0.0
  %572 = vmatpush2.msra.mxu0 0.0
  %573 = vmatprep.subr.mxu0 0.0
  %574 = vmatpush2.msra.mxu0 0.0
  %575 = vmatprep.subr.mxu0 0.0
  %576 = vmatpush2.msra.mxu0 0.0
  %577 = vmatprep.subr.mxu0 0.0
  %578 = vmatpush2.msra.mxu0 0.0
  %579 = vmatprep.subr.mxu0 0.0
  %580 = vmatpush2.msra.mxu0 0.0
  %581 = vmatprep.subr.mxu0 0.0
  %582 = vmatpush2.msra.mxu0 0.0
  %583 = vmatprep.subr.mxu0 0.0
  %584 = vmatpush2.msra.mxu0 0.0
  %585 = vmatprep.subr.mxu0 0.0
  %586 = vmatpush2.msra.mxu0 0.0
  %587 = vmatprep.subr.mxu0 0.0
  %588 = vmatpush2.msra.mxu0 0.0
  %589 = vmatprep.mubr.f32.mxu0 0.0
  %590 = vmatmul.mubr.f32.gmra.mxu0 %v499
  %v591 = vpop.f32.mrf.mxu0
  %v592 = vadd.f32 0.0, %v591
  %v593 = vpop.f32.mrf.mxu0
  %594 = vmatprep.mubr.f32.mxu0 0.0
  %595 = vmatmul.mubr.f32.gmra.mxu0 %v502
  %v596 = vpop.f32.mrf.mxu0
  %v597 = vadd.f32 0.0, %v596
  %v598 = vpop.f32.mrf.mxu0
  %599 = vmatprep.mubr.f32.mxu0 0.0
  %600 = vmatmul.mubr.f32.gmra.mxu0 %v505
  %v601 = vpop.f32.mrf.mxu0
  %v602 = vadd.f32 0.0, %v601
  %v603 = vpop.f32.mrf.mxu0
  %604 = vmatprep.mubr.f32.mxu0 0.0
  %605 = vmatmul.mubr.f32.gmra.mxu0 %v508
  %v606 = vpop.f32.mrf.mxu0
  %v607 = vadd.f32 0.0, %v606
  %v608 = vpop.f32.mrf.mxu0
  %609 = vmatprep.mubr.f32.mxu0 0.0
  %610 = vmatmul.mubr.f32.gmra.mxu0 %v511
  %v611 = vpop.f32.mrf.mxu0
  %v612 = vadd.f32 0.0, %v611
  %v613 = vpop.f32.mrf.mxu0
  %614 = vmatprep.mubr.f32.mxu0 0.0
  %615 = vmatmul.mubr.f32.gmra.mxu0 %v514
  %v616 = vpop.f32.mrf.mxu0
  %v617 = vadd.f32 0.0, %v616
  %v618 = vpop.f32.mrf.mxu0
  %619 = vmatprep.mubr.f32.mxu0 0.0
  %620 = vmatmul.mubr.f32.gmra.mxu0 %v517
  %v621 = vpop.f32.mrf.mxu0
  %v622 = vadd.f32 0.0, %v621
  %v623 = vpop.f32.mrf.mxu0
  %624 = vmatprep.mubr.f32.mxu0 0.0
  %625 = vmatmul.mubr.f32.gmra.mxu0 %v520
  %v626 = vpop.f32.mrf.mxu0
  %v627 = vadd.f32 0.0, %v626
  %v628 = vpop.f32.mrf.mxu0
  %629 = vmatprep.mubr.f32.mxu0 0.0
  %630 = vmatmul.mubr.f32.gmra.mxu0 %v523
  %v631 = vpop.f32.mrf.mxu0
  %v632 = vadd.f32 0.0, %v631
  %v633 = vpop.f32.mrf.mxu0
  %634 = vdwg.mxu0
  %v635 = vpack.c.bf16 %v597, %v592
  %v636 = vpack.c.bf16 %v607, %v602
  %v637 = vpack.c.bf16 %v617, %v612
  %v638 = vpack.c.bf16 %v627, %v622
  %v639 = vpack.c.bf16 %v632, %v632
  %v640 = vld [vmem:[%s7] sm:$0x1]
  %v642 = vlaneseq
  %v643 = vshrl.u32 %v642, 7
  %v644 = vsub.s32 0, %v643
  %v645 = vrot.slane %v640, %v644
  %v648 = vsel %vm85, %v639, 0
  %650 = vmatprep.subr.bf16.mxu0 0
  %651 = vmatpush1.bf16.msra.mxu0 0
  %652 = vmatprep.subr.bf16.mxu0 0
  %653 = vmatpush1.bf16.msra.mxu0 0
  %654 = vmatprep.subr.bf16.mxu0 0
  %655 = vmatpush1.bf16.msra.mxu0 0
  %656 = vmatprep.subr.bf16.mxu0 0
  %657 = vmatpush1.bf16.msra.mxu0 %v648
  %658 = vmatprep.subr.bf16.mxu0 0
  %659 = vmatpush1.bf16.msra.mxu0 %v638
  %660 = vmatprep.subr.bf16.mxu0 0
  %661 = vmatpush1.bf16.msra.mxu0 %v637
  %662 = vmatprep.subr.bf16.mxu0 0
  %663 = vmatpush1.bf16.msra.mxu0 %v636
  %664 = vmatprep.subr.bf16.mxu0 0
  %665 = vmatpush1.bf16.msra.mxu0 %v635
  %666 = vmatprep.subr.bf16.mxu0 0
  %667 = vmatpush2.bf16.msra.mxu0 0
  %668 = vmatprep.subr.bf16.mxu0 0
  %669 = vmatpush2.bf16.msra.mxu0 0
  %670 = vmatprep.subr.bf16.mxu0 0
  %671 = vmatpush2.bf16.msra.mxu0 0
  %672 = vmatprep.subr.bf16.mxu0 0
  %673 = vmatpush2.bf16.msra.mxu0 0
  %674 = vmatprep.subr.bf16.mxu0 0
  %675 = vmatpush2.bf16.msra.mxu0 0
  %676 = vmatprep.subr.bf16.mxu0 0
  %677 = vmatpush2.bf16.msra.mxu0 0
  %678 = vmatprep.subr.bf16.mxu0 0
  %679 = vmatpush2.bf16.msra.mxu0 0
  %680 = vmatprep.subr.bf16.mxu0 0
  %681 = vmatpush2.bf16.msra.mxu0 0
  %682 = vmatprep.mubr.bf16.mxu0 0
  %683 = vmatmul.mubr.bf16.gmra.mxu0 %v396
  %v684 = vpop.f32.mrf.mxu0
  %v685 = vadd.f32 %v645, %v684
  %v686 = vpop.f32.mrf.mxu0
  %v687 = vpop.f32.mrf.mxu0
  %v688 = vadd.f32 %v645, %v687
  %v689 = vpop.f32.mrf.mxu0
  %690 = vmatprep.mubr.bf16.mxu0 0
  %691 = vmatmul.mubr.bf16.gmra.mxu0 %v399
  %v692 = vpop.f32.mrf.mxu0
  %v693 = vadd.f32 %v645, %v692
  %v694 = vpop.f32.mrf.mxu0
  %v695 = vpop.f32.mrf.mxu0
  %v696 = vadd.f32 %v645, %v695
  %v697 = vpop.f32.mrf.mxu0
  %698 = vmatprep.mubr.bf16.mxu0 0
  %699 = vmatmul.mubr.bf16.gmra.mxu0 %v402
  %v700 = vpop.f32.mrf.mxu0
  %v701 = vadd.f32 %v645, %v700
  %v702 = vpop.f32.mrf.mxu0
  %v703 = vpop.f32.mrf.mxu0
  %v704 = vadd.f32 %v645, %v703
  %v705 = vpop.f32.mrf.mxu0
  %706 = vmatprep.mubr.bf16.mxu0 0
  %707 = vmatmul.mubr.bf16.gmra.mxu0 %v405
  %v708 = vpop.f32.mrf.mxu0
  %v709 = vadd.f32 %v645, %v708
  %v710 = vpop.f32.mrf.mxu0
  %v711 = vpop.f32.mrf.mxu0
  %v712 = vadd.f32 %v645, %v711
  %v713 = vpop.f32.mrf.mxu0
  %714 = vmatprep.mubr.bf16.mxu0 0
  %715 = vmatmul.mubr.bf16.gmra.mxu0 %v408
  %v716 = vpop.f32.mrf.mxu0
  %v717 = vadd.f32 %v645, %v716
  %v718 = vpop.f32.mrf.mxu0
  %v719 = vpop.f32.mrf.mxu0
  %v720 = vpop.f32.mrf.mxu0
  %721 = vdwg.mxu0
  %722 = vst.msk [vmem:[%s8] sm:$0xff] %vm221, %v685
  %723 = vst.msk [vmem:[%s8 + $0x8] sm:$0xff] %vm221, %v688
  %724 = vst.msk [vmem:[%s8 + $0x10] sm:$0xff] %vm221, %v693
  %725 = vst.msk [vmem:[%s8 + $0x18] sm:$0xff] %vm221, %v696
  %726 = vst.msk [vmem:[%s8 + $0x20] sm:$0xff] %vm221, %v701
  %727 = vst.msk [vmem:[%s8 + $0x28] sm:$0xff] %vm221, %v704
  %728 = vst.msk [vmem:[%s8 + $0x30] sm:$0xff] %vm221, %v709
  %729 = vst.msk [vmem:[%s8 + $0x38] sm:$0xff] %vm221, %v712
  %vm730 = vcmask 257024
  %731 = vst.msk [vmem:[%s8 + $0x40] sm:$0xf] %vm730, %v717
  // Predicated region
  $region34: #{msgda_forward.5} parent=0 // pred_check
    _
  $region35: #{msgda_forward.5} parent=0 // pred_check_branch
    %733 = sbr.rel (0) target = $region37
  $region36: #{msgda_forward.5} parent=0 // pred_region
    _
  $region37: #{msgda_forward.5} parent=0 // pred_fallthru
    _
  // Predicated region
  $region38: #{msgda_forward.5} parent=0 // pred_check
    _
  $region39: #{msgda_forward.5} parent=0 // pred_check_branch
    %735 = sbr.rel (0) target = $region41
  $region40: #{msgda_forward.5} parent=0 // pred_region
    _
  $region41: #{msgda_forward.5} parent=0 // pred_fallthru
    _

// kernel: msgda_forward.6
$region0: #{msgda_forward.6}
  #allocation0 [shape = 'u32[]', space=smem, size = 0x4, offset = 0x4, fixed_abs, tag = 'smem constant byte address 0x4 - core index']
  #allocation1 [shape = 'u32[144,128]{1,0:T(1,128)}', space=vmem, size = 0x12000, scoped, tag = 'internal scratch']
  %s0 = inlined_call_operand.vmem [shape: f32[32,32], index: 0, kind: input, shape index: {}]
  %s1 = inlined_call_operand.vmem [shape: f32[32,32], index: 1, kind: input, shape index: {}]
  %s2 = inlined_call_operand.vmem [shape: f32[32,32], index: 2, kind: output, shape index: {}]
  %s3 = sld [smem:[#allocation0]]
  $region18: #{msgda_forward.6} parent=0
    _
  %s5 = ssub.s32 1, %s3
  %s6 = scalar_select 0, %s5, %s3
  // Predicated region
  $region2: #{msgda_forward.6} parent=0 // pred_check
    _
  $region3: #{msgda_forward.6} parent=0 // pred_check_branch
    %8 = sbr.rel (0) target = $region5
  $region4: #{msgda_forward.6} parent=0 // pred_region
    _
  $region5: #{msgda_forward.6} parent=0 // pred_fallthru
    _
  // Predicated region
  $region6: #{msgda_forward.6} parent=0 // pred_check
    _
  $region7: #{msgda_forward.6} parent=0 // pred_check_branch
    %10 = sbr.rel (0) target = $region9
  $region8: #{msgda_forward.6} parent=0 // pred_region
    _
  $region9: #{msgda_forward.6} parent=0 // pred_fallthru
    _
  %v11 = vld [vmem:[%s0] sm:$0xff]
  %v12 = vld [vmem:[%s0 + $0x8] sm:$0xff]
  %v13 = vld [vmem:[%s0 + $0x10] sm:$0xff]
  %v14 = vld [vmem:[%s0 + $0x18] sm:$0xff]
  %v15 = vld [vmem:[%s1] sm:$0xff]
  %v16 = vld [vmem:[%s1 + $0x8] sm:$0xff]
  %v17 = vld [vmem:[%s1 + $0x10] sm:$0xff]
  %v18 = vld [vmem:[%s1 + $0x18] sm:$0xff]
  %vm19 = vcmask 261120
  %v21 = vsel %vm19, %v11, 0
  %v24 = vsel %vm19, %v12, 0
  %v27 = vsel %vm19, %v13, 0
  %v30 = vsel %vm19, %v14, 0
  %32 = vmatprep.subr.mxu0 0.0
  %33 = vmatpush1.msra.mxu0 0.0
  %34 = vmatprep.subr.mxu0 0.0
  %35 = vmatpush1.msra.mxu0 0.0
  %36 = vmatprep.subr.mxu0 0.0
  %37 = vmatpush1.msra.mxu0 0.0
  %38 = vmatprep.subr.mxu0 0.0
  %39 = vmatpush1.msra.mxu0 0.0
  %40 = vmatprep.subr.mxu0 0.0
  %41 = vmatpush1.msra.mxu0 0.0
  %42 = vmatprep.subr.mxu0 0.0
  %43 = vmatpush1.msra.mxu0 0.0
  %44 = vmatprep.subr.mxu0 0.0
  %45 = vmatpush1.msra.mxu0 0.0
  %46 = vmatprep.subr.mxu0 0.0
  %47 = vmatpush1.msra.mxu0 0.0
  %48 = vmatprep.subr.mxu0 0.0
  %49 = vmatpush1.msra.mxu0 0.0
  %50 = vmatprep.subr.mxu0 0.0
  %51 = vmatpush1.msra.mxu0 0.0
  %52 = vmatprep.subr.mxu0 0.0
  %53 = vmatpush1.msra.mxu0 0.0
  %54 = vmatprep.subr.mxu0 0.0
  %55 = vmatpush1.msra.mxu0 0.0
  %56 = vmatprep.subr.mxu0 0.0
  %57 = vmatpush1.msra.mxu0 %v18
  %58 = vmatprep.subr.mxu0 0.0
  %59 = vmatpush1.msra.mxu0 %v17
  %60 = vmatprep.subr.mxu0 0.0
  %61 = vmatpush1.msra.mxu0 %v16
  %62 = vmatprep.subr.mxu0 0.0
  %63 = vmatpush1.msra.mxu0 %v15
  %64 = vmatprep.subr.mxu0 0.0
  %65 = vmatpush2.msra.mxu0 0.0
  %66 = vmatprep.subr.mxu0 0.0
  %67 = vmatpush2.msra.mxu0 0.0
  %68 = vmatprep.subr.mxu0 0.0
  %69 = vmatpush2.msra.mxu0 0.0
  %70 = vmatprep.subr.mxu0 0.0
  %71 = vmatpush2.msra.mxu0 0.0
  %72 = vmatprep.subr.mxu0 0.0
  %73 = vmatpush2.msra.mxu0 0.0
  %74 = vmatprep.subr.mxu0 0.0
  %75 = vmatpush2.msra.mxu0 0.0
  %76 = vmatprep.subr.mxu0 0.0
  %77 = vmatpush2.msra.mxu0 0.0
  %78 = vmatprep.subr.mxu0 0.0
  %79 = vmatpush2.msra.mxu0 0.0
  %80 = vmatprep.subr.mxu0 0.0
  %81 = vmatpush2.msra.mxu0 0.0
  %82 = vmatprep.subr.mxu0 0.0
  %83 = vmatpush2.msra.mxu0 0.0
  %84 = vmatprep.subr.mxu0 0.0
  %85 = vmatpush2.msra.mxu0 0.0
  %86 = vmatprep.subr.mxu0 0.0
  %87 = vmatpush2.msra.mxu0 0.0
  %88 = vmatprep.subr.mxu0 0.0
  %89 = vmatpush2.msra.mxu0 0.0
  %90 = vmatprep.subr.mxu0 0.0
  %91 = vmatpush2.msra.mxu0 0.0
  %92 = vmatprep.subr.mxu0 0.0
  %93 = vmatpush2.msra.mxu0 0.0
  %94 = vmatprep.subr.mxu0 0.0
  %95 = vmatpush2.msra.mxu0 0.0
  %96 = vmatprep.mubr.f32.mxu0 0.0
  %97 = vmatmul.mubr.f32.gmra.mxu0 %v21
  %v98 = vpop.f32.mrf.mxu0
  %v99 = vadd.f32 0.0, %v98
  %v100 = vpop.f32.mrf.mxu0
  %101 = vmatprep.mubr.f32.mxu0 0.0
  %102 = vmatmul.mubr.f32.gmra.mxu0 %v24
  %v103 = vpop.f32.mrf.mxu0
  %v104 = vadd.f32 0.0, %v103
  %v105 = vpop.f32.mrf.mxu0
  %106 = vmatprep.mubr.f32.mxu0 0.0
  %107 = vmatmul.mubr.f32.gmra.mxu0 %v27
  %v108 = vpop.f32.mrf.mxu0
  %v109 = vadd.f32 0.0, %v108
  %v110 = vpop.f32.mrf.mxu0
  %111 = vmatprep.mubr.f32.mxu0 0.0
  %112 = vmatmul.mubr.f32.gmra.mxu0 %v30
  %v113 = vpop.f32.mrf.mxu0
  %v114 = vadd.f32 0.0, %v113
  %v115 = vpop.f32.mrf.mxu0
  %116 = vdwg.mxu0
  %117 = vst.msk [vmem:[%s2] sm:$0xff] %vm19, %v99
  %118 = vst.msk [vmem:[%s2 + $0x8] sm:$0xff] %vm19, %v104
  %119 = vst.msk [vmem:[%s2 + $0x10] sm:$0xff] %vm19, %v109
  %120 = vst.msk [vmem:[%s2 + $0x18] sm:$0xff] %vm19, %v114
  // Predicated region
  $region10: #{msgda_forward.6} parent=0 // pred_check
    _
  $region11: #{msgda_forward.6} parent=0 // pred_check_branch
    %122 = sbr.rel (0) target = $region13
  $region12: #{msgda_forward.6} parent=0 // pred_region
    _
  $region13: #{msgda_forward.6} parent=0 // pred_fallthru
    _
  // Predicated region
  $region14: #{msgda_forward.6} parent=0 // pred_check
    _
  $region15: #{msgda_forward.6} parent=0 // pred_check_branch
    %124 = sbr.rel (0) target = $region17
  $region16: #{msgda_forward.6} parent=0 // pred_region
    _
  $region17: #{msgda_forward.6} parent=0 // pred_fallthru
    _

// kernel: msgda_forward.7
$region0: #{msgda_forward.7}
  #allocation0 [shape = 'u32[]', space=smem, size = 0x4, offset = 0x4, fixed_abs, tag = 'smem constant byte address 0x4 - core index']
  #allocation1 [shape = 'u32[144,128]{1,0:T(1,128)}', space=vmem, size = 0x12000, scoped, tag = 'internal scratch']
  #allocation2 [shape = 'f32[1,1]{1,0:T(1,128)S(1)}', space=vmem, size = 0x200, scoped, tag = 'scoped memory for msgda_forward.7']
  %s0 = inlined_call_operand.vmem [shape: f32[32,32], index: 0, kind: input, shape index: {}]
  %s1 = inlined_call_operand.vmem [shape: bf16[32,32], index: 1, kind: input, shape index: {}]
  %s2 = inlined_call_operand.vmem [shape: f32[32,32], index: 2, kind: input, shape index: {}]
  %s3 = inlined_call_operand.vmem [shape: f32[1,32], index: 3, kind: input, shape index: {}]
  %s4 = inlined_call_operand.vmem [shape: f32[32,1], index: 4, kind: input, shape index: {}]
  %s5 = inlined_call_operand.<no memory space> [shape: f32[1,1], index: 5, kind: input, shape index: {}]
  %s6 = inlined_call_operand.vmem [shape: f32[32,32], index: 6, kind: output, shape index: {}]
  %s7 = sld [smem:[#allocation0]]
  $region34: #{msgda_forward.7} parent=0
    _
  %s9 = ssub.s32 1, %s7
  %s10 = scalar_select 0, %s9, %s7
  %v11 = vstv %s5
  %12 = vst [vmem:[#allocation2] sm:$0x1] %v11
  // Predicated region
  $region2: #{msgda_forward.7} parent=0 // pred_check
    _
  $region3: #{msgda_forward.7} parent=0 // pred_check_branch
    %14 = sbr.rel (0) target = $region5
  $region4: #{msgda_forward.7} parent=0 // pred_region
    _
  $region5: #{msgda_forward.7} parent=0 // pred_fallthru
    _
  // Predicated region
  $region6: #{msgda_forward.7} parent=0 // pred_check
    _
  $region7: #{msgda_forward.7} parent=0 // pred_check_branch
    %16 = sbr.rel (0) target = $region9
  $region8: #{msgda_forward.7} parent=0 // pred_region
    _
  $region9: #{msgda_forward.7} parent=0 // pred_fallthru
    _
  // Predicated region
  $region10: #{msgda_forward.7} parent=0 // pred_check
    _
  $region11: #{msgda_forward.7} parent=0 // pred_check_branch
    %18 = sbr.rel (0) target = $region13
  $region12: #{msgda_forward.7} parent=0 // pred_region
    _
  $region13: #{msgda_forward.7} parent=0 // pred_fallthru
    _
  // Predicated region
  $region14: #{msgda_forward.7} parent=0 // pred_check
    _
  $region15: #{msgda_forward.7} parent=0 // pred_check_branch
    %20 = sbr.rel (0) target = $region17
  $region16: #{msgda_forward.7} parent=0 // pred_region
    _
  $region17: #{msgda_forward.7} parent=0 // pred_fallthru
    _
  // Predicated region
  $region18: #{msgda_forward.7} parent=0 // pred_check
    _
  $region19: #{msgda_forward.7} parent=0 // pred_check_branch
    %22 = sbr.rel (0) target = $region21
  $region20: #{msgda_forward.7} parent=0 // pred_region
    _
  $region21: #{msgda_forward.7} parent=0 // pred_fallthru
    _
  // Predicated region
  $region22: #{msgda_forward.7} parent=0 // pred_check
    _
  $region23: #{msgda_forward.7} parent=0 // pred_check_branch
    %24 = sbr.rel (0) target = $region25
  $region24: #{msgda_forward.7} parent=0 // pred_region
    _
  $region25: #{msgda_forward.7} parent=0 // pred_fallthru
    _
  %v26 = vld [vmem:[%s0] sm:$0xff]
  %v27 = vld [vmem:[%s0 + $0x8] sm:$0xff]
  %v28 = vld [vmem:[%s0 + $0x10] sm:$0xff]
  %v29 = vld [vmem:[%s0 + $0x18] sm:$0xff]
  %v30 = vld [vmem:[%s1] sm:$0xf]
  %v31 = vld [vmem:[%s1 + $0x4] sm:$0xf]
  %v32 = vld [vmem:[%s1 + $0x8] sm:$0xf]
  %v33 = vld [vmem:[%s1 + $0xc] sm:$0xf]
  %v34 = vld [vmem:[%s2] sm:$0xff]
  %v35 = vld [vmem:[%s2 + $0x8] sm:$0xff]
  %v36 = vld [vmem:[%s2 + $0x10] sm:$0xff]
  %v37 = vld [vmem:[%s2 + $0x18] sm:$0xff]
  %vm38 = vcmask 261120
  %v40 = vsel %vm38, %v26, 0
  %v43 = vsel %vm38, %v27, 0
  %v46 = vsel %vm38, %v28, 0
  %v49 = vsel %vm38, %v29, 0
  %51 = vmatprep.subr.mxu0 0.0
  %52 = vmatpush1.msra.mxu0 0.0
  %53 = vmatprep.subr.mxu0 0.0
  %54 = vmatpush1.msra.mxu0 0.0
  %55 = vmatprep.subr.mxu0 0.0
  %56 = vmatpush1.msra.mxu0 0.0
  %57 = vmatprep.subr.mxu0 0.0
  %58 = vmatpush1.msra.mxu0 0.0
  %59 = vmatprep.subr.mxu0 0.0
  %60 = vmatpush1.msra.mxu0 0.0
  %61 = vmatprep.subr.mxu0 0.0
  %62 = vmatpush1.msra.mxu0 0.0
  %63 = vmatprep.subr.mxu0 0.0
  %64 = vmatpush1.msra.mxu0 0.0
  %65 = vmatprep.subr.mxu0 0.0
  %66 = vmatpush1.msra.mxu0 0.0
  %67 = vmatprep.subr.mxu0 0.0
  %68 = vmatpush1.msra.mxu0 0.0
  %69 = vmatprep.subr.mxu0 0.0
  %70 = vmatpush1.msra.mxu0 0.0
  %71 = vmatprep.subr.mxu0 0.0
  %72 = vmatpush1.msra.mxu0 0.0
  %73 = vmatprep.subr.mxu0 0.0
  %74 = vmatpush1.msra.mxu0 0.0
  %75 = vmatprep.subr.mxu0 0.0
  %76 = vmatpush1.msra.mxu0 %v37
  %77 = vmatprep.subr.mxu0 0.0
  %78 = vmatpush1.msra.mxu0 %v36
  %79 = vmatprep.subr.mxu0 0.0
  %80 = vmatpush1.msra.mxu0 %v35
  %81 = vmatprep.subr.mxu0 0.0
  %82 = vmatpush1.msra.mxu0 %v34
  %83 = vmatprep.subr.mxu0 0.0
  %84 = vmatpush2.msra.mxu0 0.0
  %85 = vmatprep.subr.mxu0 0.0
  %86 = vmatpush2.msra.mxu0 0.0
  %87 = vmatprep.subr.mxu0 0.0
  %88 = vmatpush2.msra.mxu0 0.0
  %89 = vmatprep.subr.mxu0 0.0
  %90 = vmatpush2.msra.mxu0 0.0
  %91 = vmatprep.subr.mxu0 0.0
  %92 = vmatpush2.msra.mxu0 0.0
  %93 = vmatprep.subr.mxu0 0.0
  %94 = vmatpush2.msra.mxu0 0.0
  %95 = vmatprep.subr.mxu0 0.0
  %96 = vmatpush2.msra.mxu0 0.0
  %97 = vmatprep.subr.mxu0 0.0
  %98 = vmatpush2.msra.mxu0 0.0
  %99 = vmatprep.subr.mxu0 0.0
  %100 = vmatpush2.msra.mxu0 0.0
  %101 = vmatprep.subr.mxu0 0.0
  %102 = vmatpush2.msra.mxu0 0.0
  %103 = vmatprep.subr.mxu0 0.0
  %104 = vmatpush2.msra.mxu0 0.0
  %105 = vmatprep.subr.mxu0 0.0
  %106 = vmatpush2.msra.mxu0 0.0
  %107 = vmatprep.subr.mxu0 0.0
  %108 = vmatpush2.msra.mxu0 0.0
  %109 = vmatprep.subr.mxu0 0.0
  %110 = vmatpush2.msra.mxu0 0.0
  %111 = vmatprep.subr.mxu0 0.0
  %112 = vmatpush2.msra.mxu0 0.0
  %113 = vmatprep.subr.mxu0 0.0
  %114 = vmatpush2.msra.mxu0 0.0
  %115 = vmatprep.mubr.f32.mxu0 0.0
  %116 = vmatmul.mubr.f32.gmra.mxu0 %v40
  %v117 = vpop.f32.mrf.mxu0
  %v118 = vadd.f32 0.0, %v117
  %v119 = vpop.f32.mrf.mxu0
  %120 = vmatprep.mubr.f32.mxu0 0.0
  %121 = vmatmul.mubr.f32.gmra.mxu0 %v43
  %v122 = vpop.f32.mrf.mxu0
  %v123 = vadd.f32 0.0, %v122
  %v124 = vpop.f32.mrf.mxu0
  %125 = vmatprep.mubr.f32.mxu0 0.0
  %126 = vmatmul.mubr.f32.gmra.mxu0 %v46
  %v127 = vpop.f32.mrf.mxu0
  %v128 = vadd.f32 0.0, %v127
  %v129 = vpop.f32.mrf.mxu0
  %130 = vmatprep.mubr.f32.mxu0 0.0
  %131 = vmatmul.mubr.f32.gmra.mxu0 %v49
  %v132 = vpop.f32.mrf.mxu0
  %v133 = vadd.f32 0.0, %v132
  %v134 = vpop.f32.mrf.mxu0
  %135 = vdwg.mxu0
  %v136 = vpack.c.bf16 %v123, %v118
  %v137 = vpack.c.bf16 %v133, %v128
  %v138 = vld [vmem:[%s3] sm:$0x1]
  %v140 = vlaneseq
  %v141 = vshrl.u32 %v140, 7
  %v142 = vsub.s32 0, %v141
  %v143 = vrot.slane %v138, %v142
  %v149 = vunpack.c.l.b16 %v30
  %v150 = vunpack.c.l.b16 %v31
  %v151 = vunpack.c.l.b16 %v32
  %v152 = vunpack.c.l.b16 %v33
  %v153 = vpack.c.b16 %v150, %v149
  %v154 = vpack.c.b16 %v152, %v151
  %v156 = vsel %vm38, %v153, 0
  %v159 = vsel %vm38, %v154, 0
  %161 = vmatprep.subr.bf16.mxu0 0
  %162 = vmatpush1.bf16.msra.mxu0 0
  %163 = vmatprep.subr.bf16.mxu0 0
  %164 = vmatpush1.bf16.msra.mxu0 0
  %165 = vmatprep.subr.bf16.mxu0 0
  %166 = vmatpush1.bf16.msra.mxu0 0
  %167 = vmatprep.subr.bf16.mxu0 0
  %168 = vmatpush1.bf16.msra.mxu0 0
  %169 = vmatprep.subr.bf16.mxu0 0
  %170 = vmatpush1.bf16.msra.mxu0 0
  %171 = vmatprep.subr.bf16.mxu0 0
  %172 = vmatpush1.bf16.msra.mxu0 0
  %173 = vmatprep.subr.bf16.mxu0 0
  %174 = vmatpush1.bf16.msra.mxu0 %v137
  %175 = vmatprep.subr.bf16.mxu0 0
  %176 = vmatpush1.bf16.msra.mxu0 %v136
  %177 = vmatprep.subr.bf16.mxu0 0
  %178 = vmatpush2.bf16.msra.mxu0 0
  %179 = vmatprep.subr.bf16.mxu0 0
  %180 = vmatpush2.bf16.msra.mxu0 0
  %181 = vmatprep.subr.bf16.mxu0 0
  %182 = vmatpush2.bf16.msra.mxu0 0
  %183 = vmatprep.subr.bf16.mxu0 0
  %184 = vmatpush2.bf16.msra.mxu0 0
  %185 = vmatprep.subr.bf16.mxu0 0
  %186 = vmatpush2.bf16.msra.mxu0 0
  %187 = vmatprep.subr.bf16.mxu0 0
  %188 = vmatpush2.bf16.msra.mxu0 0
  %189 = vmatprep.subr.bf16.mxu0 0
  %190 = vmatpush2.bf16.msra.mxu0 0
  %191 = vmatprep.subr.bf16.mxu0 0
  %192 = vmatpush2.bf16.msra.mxu0 0
  %193 = vmatprep.mubr.bf16.mxu0 0
  %194 = vmatmul.mubr.bf16.gmra.mxu0 %v156
  %v195 = vpop.f32.mrf.mxu0
  %v196 = vadd.f32 %v143, %v195
  %v197 = vpop.f32.mrf.mxu0
  %v198 = vpop.f32.mrf.mxu0
  %v199 = vadd.f32 %v143, %v198
  %v200 = vpop.f32.mrf.mxu0
  %201 = vmatprep.mubr.bf16.mxu0 0
  %202 = vmatmul.mubr.bf16.gmra.mxu0 %v159
  %v203 = vpop.f32.mrf.mxu0
  %v204 = vadd.f32 %v143, %v203
  %v205 = vpop.f32.mrf.mxu0
  %v206 = vpop.f32.mrf.mxu0
  %v207 = vadd.f32 %v143, %v206
  %v208 = vpop.f32.mrf.mxu0
  %209 = vdwg.mxu0
  %v210 = vld [vmem:[%s4] sm:$0xff]
  %v211 = vld [vmem:[%s4 + $0x8] sm:$0xff]
  %v212 = vld [vmem:[%s4 + $0x10] sm:$0xff]
  %v213 = vld [vmem:[%s4 + $0x18] sm:$0xff]
  %v214 = vld [vmem:[#allocation2] sm:$0x1]
  %v216 = vlaneseq
  %v217 = vshrl.u32 %v216, 7
  %v218 = vsub.s32 0, %v217
  %v219 = vrot.slane %v214, %v218
  %221 = vmatprep.subr.mxu0 0.0
  %222 = vmatpush1.msra.mxu0 0.0
  %223 = vmatprep.subr.mxu0 0.0
  %224 = vmatpush1.msra.mxu0 0.0
  %225 = vmatprep.subr.mxu0 0.0
  %226 = vmatpush1.msra.mxu0 0.0
  %227 = vmatprep.subr.mxu0 0.0
  %228 = vmatpush1.msra.mxu0 0.0
  %229 = vmatprep.subr.mxu0 0.0
  %230 = vmatpush1.msra.mxu0 0.0
  %231 = vmatprep.subr.mxu0 0.0
  %232 = vmatpush1.msra.mxu0 0.0
  %233 = vmatprep.subr.mxu0 0.0
  %234 = vmatpush1.msra.mxu0 0.0
  %235 = vmatprep.subr.mxu0 0.0
  %236 = vmatpush1.msra.mxu0 0.0
  %237 = vmatprep.subr.mxu0 0.0
  %238 = vmatpush1.msra.mxu0 0.0
  %239 = vmatprep.subr.mxu0 0.0
  %240 = vmatpush1.msra.mxu0 0.0
  %241 = vmatprep.subr.mxu0 0.0
  %242 = vmatpush1.msra.mxu0 0.0
  %243 = vmatprep.subr.mxu0 0.0
  %244 = vmatpush1.msra.mxu0 0.0
  %245 = vmatprep.subr.mxu0 0.0
  %246 = vmatpush1.msra.mxu0 %v213
  %247 = vmatprep.subr.mxu0 0.0
  %248 = vmatpush1.msra.mxu0 %v212
  %249 = vmatprep.subr.mxu0 0.0
  %250 = vmatpush1.msra.mxu0 %v211
  %251 = vmatprep.subr.mxu0 0.0
  %252 = vmatpush1.msra.mxu0 %v210
  %253 = vmatprep.subr.mxu0 0.0
  %254 = vmatpush2.msra.mxu0 0.0
  %255 = vmatprep.subr.mxu0 0.0
  %256 = vmatpush2.msra.mxu0 0.0
  %257 = vmatprep.subr.mxu0 0.0
  %258 = vmatpush2.msra.mxu0 0.0
  %259 = vmatprep.subr.mxu0 0.0
  %260 = vmatpush2.msra.mxu0 0.0
  %261 = vmatprep.subr.mxu0 0.0
  %262 = vmatpush2.msra.mxu0 0.0
  %263 = vmatprep.subr.mxu0 0.0
  %264 = vmatpush2.msra.mxu0 0.0
  %265 = vmatprep.subr.mxu0 0.0
  %266 = vmatpush2.msra.mxu0 0.0
  %267 = vmatprep.subr.mxu0 0.0
  %268 = vmatpush2.msra.mxu0 0.0
  %269 = vmatprep.subr.mxu0 0.0
  %270 = vmatpush2.msra.mxu0 0.0
  %271 = vmatprep.subr.mxu0 0.0
  %272 = vmatpush2.msra.mxu0 0.0
  %273 = vmatprep.subr.mxu0 0.0
  %274 = vmatpush2.msra.mxu0 0.0
  %275 = vmatprep.subr.mxu0 0.0
  %276 = vmatpush2.msra.mxu0 0.0
  %277 = vmatprep.subr.mxu0 0.0
  %278 = vmatpush2.msra.mxu0 0.0
  %279 = vmatprep.subr.mxu0 0.0
  %280 = vmatpush2.msra.mxu0 0.0
  %281 = vmatprep.subr.mxu0 0.0
  %282 = vmatpush2.msra.mxu0 0.0
  %283 = vmatprep.subr.mxu0 0.0
  %284 = vmatpush2.msra.mxu0 0.0
  %285 = vmatprep.mubr.f32.mxu0 0.0
  %286 = vmatmul.mubr.f32.gmra.mxu0 %v40
  %v287 = vpop.f32.mrf.mxu0
  %v288 = vadd.f32 %v219, %v287
  %v289 = vpop.f32.mrf.mxu0
  %290 = vmatprep.mubr.f32.mxu0 0.0
  %291 = vmatmul.mubr.f32.gmra.mxu0 %v43
  %v292 = vpop.f32.mrf.mxu0
  %v293 = vadd.f32 %v219, %v292
  %v294 = vpop.f32.mrf.mxu0
  %295 = vmatprep.mubr.f32.mxu0 0.0
  %296 = vmatmul.mubr.f32.gmra.mxu0 %v46
  %v297 = vpop.f32.mrf.mxu0
  %v298 = vadd.f32 %v219, %v297
  %v299 = vpop.f32.mrf.mxu0
  %300 = vmatprep.mubr.f32.mxu0 0.0
  %301 = vmatmul.mubr.f32.gmra.mxu0 %v49
  %v302 = vpop.f32.mrf.mxu0
  %v303 = vadd.f32 %v219, %v302
  %v304 = vpop.f32.mrf.mxu0
  %305 = vdwg.mxu0
  %v307 = vsel %vm38, %v196, 0
  %v310 = vsel %vm38, %v199, 0
  %v313 = vsel %vm38, %v204, 0
  %v316 = vsel %vm38, %v207, 0
  %318 = vmatprep.subr.mxu0 0.0
  %319 = vmatpush1.msra.mxu0 0.0
  %320 = vmatprep.subr.mxu0 0.0
  %321 = vmatpush1.msra.mxu0 0.0
  %322 = vmatprep.subr.mxu0 0.0
  %323 = vmatpush1.msra.mxu0 0.0
  %324 = vmatprep.subr.mxu0 0.0
  %325 = vmatpush1.msra.mxu0 0.0
  %326 = vmatprep.subr.mxu0 0.0
  %327 = vmatpush1.msra.mxu0 0.0
  %328 = vmatprep.subr.mxu0 0.0
  %329 = vmatpush1.msra.mxu0 0.0
  %330 = vmatprep.subr.mxu0 0.0
  %331 = vmatpush1.msra.mxu0 0.0
  %332 = vmatprep.subr.mxu0 0.0
  %333 = vmatpush1.msra.mxu0 0.0
  %334 = vmatprep.subr.mxu0 0.0
  %335 = vmatpush1.msra.mxu0 0.0
  %336 = vmatprep.subr.mxu0 0.0
  %337 = vmatpush1.msra.mxu0 0.0
  %338 = vmatprep.subr.mxu0 0.0
  %339 = vmatpush1.msra.mxu0 0.0
  %340 = vmatprep.subr.mxu0 0.0
  %341 = vmatpush1.msra.mxu0 0.0
  %342 = vmatprep.subr.mxu0 0.0
  %343 = vmatpush1.msra.mxu0 %v213
  %344 = vmatprep.subr.mxu0 0.0
  %345 = vmatpush1.msra.mxu0 %v212
  %346 = vmatprep.subr.mxu0 0.0
  %347 = vmatpush1.msra.mxu0 %v211
  %348 = vmatprep.subr.mxu0 0.0
  %349 = vmatpush1.msra.mxu0 %v210
  %350 = vmatprep.subr.mxu0 0.0
  %351 = vmatpush2.msra.mxu0 0.0
  %352 = vmatprep.subr.mxu0 0.0
  %353 = vmatpush2.msra.mxu0 0.0
  %354 = vmatprep.subr.mxu0 0.0
  %355 = vmatpush2.msra.mxu0 0.0
  %356 = vmatprep.subr.mxu0 0.0
  %357 = vmatpush2.msra.mxu0 0.0
  %358 = vmatprep.subr.mxu0 0.0
  %359 = vmatpush2.msra.mxu0 0.0
  %360 = vmatprep.subr.mxu0 0.0
  %361 = vmatpush2.msra.mxu0 0.0
  %362 = vmatprep.subr.mxu0 0.0
  %363 = vmatpush2.msra.mxu0 0.0
  %364 = vmatprep.subr.mxu0 0.0
  %365 = vmatpush2.msra.mxu0 0.0
  %366 = vmatprep.subr.mxu0 0.0
  %367 = vmatpush2.msra.mxu0 0.0
  %368 = vmatprep.subr.mxu0 0.0
  %369 = vmatpush2.msra.mxu0 0.0
  %370 = vmatprep.subr.mxu0 0.0
  %371 = vmatpush2.msra.mxu0 0.0
  %372 = vmatprep.subr.mxu0 0.0
  %373 = vmatpush2.msra.mxu0 0.0
  %374 = vmatprep.subr.mxu0 0.0
  %375 = vmatpush2.msra.mxu0 0.0
  %376 = vmatprep.subr.mxu0 0.0
  %377 = vmatpush2.msra.mxu0 0.0
  %378 = vmatprep.subr.mxu0 0.0
  %379 = vmatpush2.msra.mxu0 0.0
  %380 = vmatprep.subr.mxu0 0.0
  %381 = vmatpush2.msra.mxu0 0.0
  %382 = vmatprep.mubr.f32.mxu0 0.0
  %383 = vmatmul.mubr.f32.gmra.mxu0 %v307
  %v384 = vpop.f32.mrf.mxu0
  %v385 = vadd.f32 %v219, %v384
  %v386 = vpop.f32.mrf.mxu0
  %387 = vmatprep.mubr.f32.mxu0 0.0
  %388 = vmatmul.mubr.f32.gmra.mxu0 %v310
  %v389 = vpop.f32.mrf.mxu0
  %v390 = vadd.f32 %v219, %v389
  %v391 = vpop.f32.mrf.mxu0
  %392 = vmatprep.mubr.f32.mxu0 0.0
  %393 = vmatmul.mubr.f32.gmra.mxu0 %v313
  %v394 = vpop.f32.mrf.mxu0
  %v395 = vadd.f32 %v219, %v394
  %v396 = vpop.f32.mrf.mxu0
  %397 = vmatprep.mubr.f32.mxu0 0.0
  %398 = vmatmul.mubr.f32.gmra.mxu0 %v316
  %v399 = vpop.f32.mrf.mxu0
  %v400 = vadd.f32 %v219, %v399
  %v401 = vpop.f32.mrf.mxu0
  %402 = vdwg.mxu0
  %v403 = vmax.f32 %v288, %v385
  %v404 = vmax.f32 %v293, %v390
  %v405 = vmax.f32 %v298, %v395
  %v406 = vmax.f32 %v303, %v400
  %v407 = vsub.f32 %v288, %v403
  %v408 = vsub.f32 %v293, %v404
  %v409 = vsub.f32 %v298, %v405
  %v410 = vsub.f32 %v303, %v406
  %v411 = vmul.f32 %v407, 1.442695
  %v412 = vpow.pop %v411
  %v413 = vmul.f32 %v408, 1.442695
  %v414 = vpow.pop %v413
  %v415 = vmul.f32 %v409, 1.442695
  %v416 = vpow.pop %v415
  %v417 = vmul.f32 %v410, 1.442695
  %v418 = vpow.pop %v417
  %v419 = vsub.f32 %v385, %v403
  %v420 = vsub.f32 %v390, %v404
  %v421 = vsub.f32 %v395, %v405
  %v422 = vsub.f32 %v400, %v406
  %v423 = vmul.f32 %v419, 1.442695
  %v424 = vpow.pop %v423
  %v425 = vmul.f32 %v420, 1.442695
  %v426 = vpow.pop %v425
  %v427 = vmul.f32 %v421, 1.442695
  %v428 = vpow.pop %v427
  %v429 = vmul.f32 %v422, 1.442695
  %v430 = vpow.pop %v429
  %v431 = vadd.f32 %v412, %v424
  %v432 = vadd.f32 %v414, %v426
  %v433 = vadd.f32 %v416, %v428
  %v434 = vadd.f32 %v418, %v430
  %v435 = vrcp.pop %v431
  %v436 = vrcp.pop %v432
  %v437 = vrcp.pop %v433
  %v438 = vrcp.pop %v434
  %440 = vset.pattern.permute.xlu0 0
  %441 = vperm.xlu0 %440, %v412
  %v442 = vpop.permute.xlu0 %441
  %445 = vset.pattern.permute.xlu0 0
  %446 = vperm.xlu0 %445, %v414
  %v447 = vpop.permute.xlu0 %446
  %450 = vset.pattern.permute.xlu0 0
  %451 = vperm.xlu0 %450, %v416
  %v452 = vpop.permute.xlu0 %451
  %455 = vset.pattern.permute.xlu0 0
  %456 = vperm.xlu0 %455, %v418
  %v457 = vpop.permute.xlu0 %456
  %v459 = vmul.f32 %v442, %v26
  %v460 = vmul.f32 %v447, %v27
  %v461 = vmul.f32 %v452, %v28
  %v462 = vmul.f32 %v457, %v29
  %464 = vset.pattern.permute.xlu0 0
  %465 = vperm.xlu0 %464, %v424
  %v466 = vpop.permute.xlu0 %465
  %469 = vset.pattern.permute.xlu0 0
  %470 = vperm.xlu0 %469, %v426
  %v471 = vpop.permute.xlu0 %470
  %474 = vset.pattern.permute.xlu0 0
  %475 = vperm.xlu0 %474, %v428
  %v476 = vpop.permute.xlu0 %475
  %479 = vset.pattern.permute.xlu0 0
  %480 = vperm.xlu0 %479, %v430
  %v481 = vpop.permute.xlu0 %480
  %v483 = vmul.f32 %v466, %v196
  %v484 = vmul.f32 %v471, %v199
  %v485 = vmul.f32 %v476, %v204
  %v486 = vmul.f32 %v481, %v207
  %v487 = vadd.f32 %v459, %v483
  %v488 = vadd.f32 %v460, %v484
  %v489 = vadd.f32 %v461, %v485
  %v490 = vadd.f32 %v462, %v486
  %492 = vset.pattern.permute.xlu0 0
  %493 = vperm.xlu0 %492, %v435
  %v494 = vpop.permute.xlu0 %493
  %497 = vset.pattern.permute.xlu0 0
  %498 = vperm.xlu0 %497, %v436
  %v499 = vpop.permute.xlu0 %498
  %502 = vset.pattern.permute.xlu0 0
  %503 = vperm.xlu0 %502, %v437
  %v504 = vpop.permute.xlu0 %503
  %507 = vset.pattern.permute.xlu0 0
  %508 = vperm.xlu0 %507, %v438
  %v509 = vpop.permute.xlu0 %508
  %v511 = vmul.f32 %v487, %v494
  %v512 = vmul.f32 %v488, %v499
  %v513 = vmul.f32 %v489, %v504
  %v514 = vmul.f32 %v490, %v509
  %515 = vst.msk [vmem:[%s6] sm:$0xff] %vm38, %v511
  %516 = vst.msk [vmem:[%s6 + $0x8] sm:$0xff] %vm38, %v512
  %517 = vst.msk [vmem:[%s6 + $0x10] sm:$0xff] %vm38, %v513
  %518 = vst.msk [vmem:[%s6 + $0x18] sm:$0xff] %vm38, %v514
  // Predicated region
  $region26: #{msgda_forward.7} parent=0 // pred_check
    _
  $region27: #{msgda_forward.7} parent=0 // pred_check_branch
    %520 = sbr.rel (0) target = $region29
  $region28: #{msgda_forward.7} parent=0 // pred_region
    _
  $region29: #{msgda_forward.7} parent=0 // pred_fallthru
    _
  // Predicated region
  $region30: #{msgda_forward.7} parent=0 // pred_check
    _
  $region31: #{msgda_forward.7} parent=0 // pred_check_branch
    %522 = sbr.rel (0) target = $region33
  $region32: #{msgda_forward.7} parent=0 // pred_region
    _
  $region33: #{msgda_forward.7} parent=0 // pred_fallthru
    _

// kernel: msgda_forward.9
$region0: #{msgda_forward.9}
  #allocation0 [shape = 'u32[]', space=smem, size = 0x4, offset = 0x4, fixed_abs, tag = 'smem constant byte address 0x4 - core index']
  #allocation1 [shape = 'u32[144,128]{1,0:T(1,128)}', space=vmem, size = 0x12000, scoped, tag = 'internal scratch']
  %s0 = inlined_call_operand.vmem [shape: f32[48,32], index: 0, kind: input, shape index: {}]
  %s1 = inlined_call_operand.vmem [shape: f32[48,2], index: 1, kind: input, shape index: {}]
  %s2 = inlined_call_operand.vmem [shape: f32[32,33], index: 2, kind: input, shape index: {}]
  %s3 = inlined_call_operand.vmem [shape: f32[1,33], index: 3, kind: input, shape index: {}]
  %s4 = inlined_call_operand.vmem [shape: f32[32,2], index: 4, kind: input, shape index: {}]
  %s5 = inlined_call_operand.vmem [shape: f32[1,2], index: 5, kind: input, shape index: {}]
  %s6 = inlined_call_operand.vmem [shape: f32[3,2], index: 6, kind: output, shape index: {}]
  %s7 = sld [smem:[#allocation0]]
  $region34: #{msgda_forward.9} parent=0
    _
  %s9 = ssub.s32 1, %s7
  %s10 = scalar_select 0, %s9, %s7
  // Predicated region
  $region2: #{msgda_forward.9} parent=0 // pred_check
    _
  $region3: #{msgda_forward.9} parent=0 // pred_check_branch
    %12 = sbr.rel (0) target = $region5
  $region4: #{msgda_forward.9} parent=0 // pred_region
    _
  $region5: #{msgda_forward.9} parent=0 // pred_fallthru
    _
  // Predicated region
  $region6: #{msgda_forward.9} parent=0 // pred_check
    _
  $region7: #{msgda_forward.9} parent=0 // pred_check_branch
    %14 = sbr.rel (0) target = $region9
  $region8: #{msgda_forward.9} parent=0 // pred_region
    _
  $region9: #{msgda_forward.9} parent=0 // pred_fallthru
    _
  // Predicated region
  $region10: #{msgda_forward.9} parent=0 // pred_check
    _
  $region11: #{msgda_forward.9} parent=0 // pred_check_branch
    %16 = sbr.rel (0) target = $region13
  $region12: #{msgda_forward.9} parent=0 // pred_region
    _
  $region13: #{msgda_forward.9} parent=0 // pred_fallthru
    _
  // Predicated region
  $region14: #{msgda_forward.9} parent=0 // pred_check
    _
  $region15: #{msgda_forward.9} parent=0 // pred_check_branch
    %18 = sbr.rel (0) target = $region17
  $region16: #{msgda_forward.9} parent=0 // pred_region
    _
  $region17: #{msgda_forward.9} parent=0 // pred_fallthru
    _
  // Predicated region
  $region18: #{msgda_forward.9} parent=0 // pred_check
    _
  $region19: #{msgda_forward.9} parent=0 // pred_check_branch
    %20 = sbr.rel (0) target = $region21
  $region20: #{msgda_forward.9} parent=0 // pred_region
    _
  $region21: #{msgda_forward.9} parent=0 // pred_fallthru
    _
  // Predicated region
  $region22: #{msgda_forward.9} parent=0 // pred_check
    _
  $region23: #{msgda_forward.9} parent=0 // pred_check_branch
    %22 = sbr.rel (0) target = $region25
  $region24: #{msgda_forward.9} parent=0 // pred_region
    _
  $region25: #{msgda_forward.9} parent=0 // pred_fallthru
    _
  %v23 = vld [vmem:[%s0] sm:$0xff]
  %v24 = vld [vmem:[%s0 + $0x8] sm:$0xff]
  %v25 = vld [vmem:[%s0 + $0x10] sm:$0xff]
  %v26 = vld [vmem:[%s0 + $0x18] sm:$0xff]
  %v27 = vld [vmem:[%s0 + $0x20] sm:$0xff]
  %v28 = vld [vmem:[%s0 + $0x28] sm:$0xff]
  %v29 = vld [vmem:[%s1] sm:$0xff]
  %v30 = vld [vmem:[%s1 + $0x8] sm:$0xff]
  %v31 = vld [vmem:[%s1 + $0x10] sm:$0xff]
  %v32 = vld [vmem:[%s1 + $0x18] sm:$0xff]
  %v33 = vld [vmem:[%s1 + $0x20] sm:$0xff]
  %v34 = vld [vmem:[%s1 + $0x28] sm:$0xff]
  %v35 = vld [vmem:[%s2] sm:$0xff]
  %v36 = vld [vmem:[%s2 + $0x8] sm:$0xff]
  %v37 = vld [vmem:[%s2 + $0x10] sm:$0xff]
  %v38 = vld [vmem:[%s2 + $0x18] sm:$0xff]
  %v39 = vld [vmem:[%s3] sm:$0x1]
  %v41 = vlaneseq
  %v42 = vshrl.u32 %v41, 7
  %v43 = vsub.s32 0, %v42
  %v44 = vrot.slane %v39, %v43
  %vm46 = vcmask 261120
  %v48 = vsel %vm46, %v23, 0
  %v51 = vsel %vm46, %v24, 0
  %v54 = vsel %vm46, %v25, 0
  %v57 = vsel %vm46, %v26, 0
  %v60 = vsel %vm46, %v27, 0
  %v63 = vsel %vm46, %v28, 0
  %65 = vmatprep.subr.mxu0 0.0
  %66 = vmatpush1.msra.mxu0 0.0
  %67 = vmatprep.subr.mxu0 0.0
  %68 = vmatpush1.msra.mxu0 0.0
  %69 = vmatprep.subr.mxu0 0.0
  %70 = vmatpush1.msra.mxu0 0.0
  %71 = vmatprep.subr.mxu0 0.0
  %72 = vmatpush1.msra.mxu0 0.0
  %73 = vmatprep.subr.mxu0 0.0
  %74 = vmatpush1.msra.mxu0 0.0
  %75 = vmatprep.subr.mxu0 0.0
  %76 = vmatpush1.msra.mxu0 0.0
  %77 = vmatprep.subr.mxu0 0.0
  %78 = vmatpush1.msra.mxu0 0.0
  %79 = vmatprep.subr.mxu0 0.0
  %80 = vmatpush1.msra.mxu0 0.0
  %81 = vmatprep.subr.mxu0 0.0
  %82 = vmatpush1.msra.mxu0 0.0
  %83 = vmatprep.subr.mxu0 0.0
  %84 = vmatpush1.msra.mxu0 0.0
  %85 = vmatprep.subr.mxu0 0.0
  %86 = vmatpush1.msra.mxu0 0.0
  %87 = vmatprep.subr.mxu0 0.0
  %88 = vmatpush1.msra.mxu0 0.0
  %89 = vmatprep.subr.mxu0 0.0
  %90 = vmatpush1.msra.mxu0 %v38
  %91 = vmatprep.subr.mxu0 0.0
  %92 = vmatpush1.msra.mxu0 %v37
  %93 = vmatprep.subr.mxu0 0.0
  %94 = vmatpush1.msra.mxu0 %v36
  %95 = vmatprep.subr.mxu0 0.0
  %96 = vmatpush1.msra.mxu0 %v35
  %97 = vmatprep.subr.mxu0 0.0
  %98 = vmatpush2.msra.mxu0 0.0
  %99 = vmatprep.subr.mxu0 0.0
  %100 = vmatpush2.msra.mxu0 0.0
  %101 = vmatprep.subr.mxu0 0.0
  %102 = vmatpush2.msra.mxu0 0.0
  %103 = vmatprep.subr.mxu0 0.0
  %104 = vmatpush2.msra.mxu0 0.0
  %105 = vmatprep.subr.mxu0 0.0
  %106 = vmatpush2.msra.mxu0 0.0
  %107 = vmatprep.subr.mxu0 0.0
  %108 = vmatpush2.msra.mxu0 0.0
  %109 = vmatprep.subr.mxu0 0.0
  %110 = vmatpush2.msra.mxu0 0.0
  %111 = vmatprep.subr.mxu0 0.0
  %112 = vmatpush2.msra.mxu0 0.0
  %113 = vmatprep.subr.mxu0 0.0
  %114 = vmatpush2.msra.mxu0 0.0
  %115 = vmatprep.subr.mxu0 0.0
  %116 = vmatpush2.msra.mxu0 0.0
  %117 = vmatprep.subr.mxu0 0.0
  %118 = vmatpush2.msra.mxu0 0.0
  %119 = vmatprep.subr.mxu0 0.0
  %120 = vmatpush2.msra.mxu0 0.0
  %121 = vmatprep.subr.mxu0 0.0
  %122 = vmatpush2.msra.mxu0 0.0
  %123 = vmatprep.subr.mxu0 0.0
  %124 = vmatpush2.msra.mxu0 0.0
  %125 = vmatprep.subr.mxu0 0.0
  %126 = vmatpush2.msra.mxu0 0.0
  %127 = vmatprep.subr.mxu0 0.0
  %128 = vmatpush2.msra.mxu0 0.0
  %129 = vmatprep.mubr.f32.mxu0 0.0
  %130 = vmatmul.mubr.f32.gmra.mxu0 %v48
  %v131 = vpop.f32.mrf.mxu0
  %v132 = vadd.f32 %v44, %v131
  %v133 = vpop.f32.mrf.mxu0
  %134 = vmatprep.mubr.f32.mxu0 0.0
  %135 = vmatmul.mubr.f32.gmra.mxu0 %v51
  %v136 = vpop.f32.mrf.mxu0
  %v137 = vadd.f32 %v44, %v136
  %v138 = vpop.f32.mrf.mxu0
  %139 = vmatprep.mubr.f32.mxu0 0.0
  %140 = vmatmul.mubr.f32.gmra.mxu0 %v54
  %v141 = vpop.f32.mrf.mxu0
  %v142 = vadd.f32 %v44, %v141
  %v143 = vpop.f32.mrf.mxu0
  %144 = vmatprep.mubr.f32.mxu0 0.0
  %145 = vmatmul.mubr.f32.gmra.mxu0 %v57
  %v146 = vpop.f32.mrf.mxu0
  %v147 = vadd.f32 %v44, %v146
  %v148 = vpop.f32.mrf.mxu0
  %149 = vmatprep.mubr.f32.mxu0 0.0
  %150 = vmatmul.mubr.f32.gmra.mxu0 %v60
  %v151 = vpop.f32.mrf.mxu0
  %v152 = vadd.f32 %v44, %v151
  %v153 = vpop.f32.mrf.mxu0
  %154 = vmatprep.mubr.f32.mxu0 0.0
  %155 = vmatmul.mubr.f32.gmra.mxu0 %v63
  %v156 = vpop.f32.mrf.mxu0
  %v157 = vadd.f32 %v44, %v156
  %v158 = vpop.f32.mrf.mxu0
  %159 = vdwg.mxu0
  %v160 = vmax.f32 %v132, 0.0
  %v161 = vmax.f32 %v137, 0.0
  %v162 = vmax.f32 %v142, 0.0
  %v163 = vmax.f32 %v147, 0.0
  %v164 = vmax.f32 %v152, 0.0
  %v165 = vmax.f32 %v157, 0.0
  %v166 = vsub.f32 0.0, %v132
  %v167 = vsub.f32 0.0, %v137
  %v168 = vsub.f32 0.0, %v142
  %v169 = vsub.f32 0.0, %v147
  %v170 = vsub.f32 0.0, %v152
  %v171 = vsub.f32 0.0, %v157
  %v172 = vmul.f32 %v166, 1.442695
  %v173 = vpow.pop %v172
  %v174 = vmul.f32 %v167, 1.442695
  %v175 = vpow.pop %v174
  %v176 = vmul.f32 %v168, 1.442695
  %v177 = vpow.pop %v176
  %v178 = vmul.f32 %v169, 1.442695
  %v179 = vpow.pop %v178
  %v180 = vmul.f32 %v170, 1.442695
  %v181 = vpow.pop %v180
  %v182 = vmul.f32 %v171, 1.442695
  %v183 = vpow.pop %v182
  %v184 = vadd.f32 %v173, 1.0
  %v185 = vadd.f32 %v175, 1.0
  %v186 = vadd.f32 %v177, 1.0
  %v187 = vadd.f32 %v179, 1.0
  %v188 = vadd.f32 %v181, 1.0
  %v189 = vadd.f32 %v183, 1.0
  %v190 = vrcp.pop %v184
  %v191 = vmul.f32 1.0, %v190
  %v192 = vrcp.pop %v185
  %v193 = vmul.f32 1.0, %v192
  %v194 = vrcp.pop %v186
  %v195 = vmul.f32 1.0, %v194
  %v196 = vrcp.pop %v187
  %v197 = vmul.f32 1.0, %v196
  %v198 = vrcp.pop %v188
  %v199 = vmul.f32 1.0, %v198
  %v200 = vrcp.pop %v189
  %v201 = vmul.f32 1.0, %v200
  %v202 = vld [vmem:[%s4] sm:$0xff]
  %v203 = vld [vmem:[%s4 + $0x8] sm:$0xff]
  %v204 = vld [vmem:[%s4 + $0x10] sm:$0xff]
  %v205 = vld [vmem:[%s4 + $0x18] sm:$0xff]
  %v206 = vld [vmem:[%s5] sm:$0x1]
  %v208 = vlaneseq
  %v209 = vshrl.u32 %v208, 7
  %v210 = vsub.s32 0, %v209
  %v211 = vrot.slane %v206, %v210
  %v214 = vsel %vm46, %v160, 0
  %v217 = vsel %vm46, %v161, 0
  %v220 = vsel %vm46, %v162, 0
  %v223 = vsel %vm46, %v163, 0
  %v226 = vsel %vm46, %v164, 0
  %v229 = vsel %vm46, %v165, 0
  %231 = vmatprep.subr.mxu0 0.0
  %232 = vmatpush1.msra.mxu0 0.0
  %233 = vmatprep.subr.mxu0 0.0
  %234 = vmatpush1.msra.mxu0 0.0
  %235 = vmatprep.subr.mxu0 0.0
  %236 = vmatpush1.msra.mxu0 0.0
  %237 = vmatprep.subr.mxu0 0.0
  %238 = vmatpush1.msra.mxu0 0.0
  %239 = vmatprep.subr.mxu0 0.0
  %240 = vmatpush1.msra.mxu0 0.0
  %241 = vmatprep.subr.mxu0 0.0
  %242 = vmatpush1.msra.mxu0 0.0
  %243 = vmatprep.subr.mxu0 0.0
  %244 = vmatpush1.msra.mxu0 0.0
  %245 = vmatprep.subr.mxu0 0.0
  %246 = vmatpush1.msra.mxu0 0.0
  %247 = vmatprep.subr.mxu0 0.0
  %248 = vmatpush1.msra.mxu0 0.0
  %249 = vmatprep.subr.mxu0 0.0
  %250 = vmatpush1.msra.mxu0 0.0
  %251 = vmatprep.subr.mxu0 0.0
  %252 = vmatpush1.msra.mxu0 0.0
  %253 = vmatprep.subr.mxu0 0.0
  %254 = vmatpush1.msra.mxu0 0.0
  %255 = vmatprep.subr.mxu0 0.0
  %256 = vmatpush1.msra.mxu0 %v205
  %257 = vmatprep.subr.mxu0 0.0
  %258 = vmatpush1.msra.mxu0 %v204
  %259 = vmatprep.subr.mxu0 0.0
  %260 = vmatpush1.msra.mxu0 %v203
  %261 = vmatprep.subr.mxu0 0.0
  %262 = vmatpush1.msra.mxu0 %v202
  %263 = vmatprep.subr.mxu0 0.0
  %264 = vmatpush2.msra.mxu0 0.0
  %265 = vmatprep.subr.mxu0 0.0
  %266 = vmatpush2.msra.mxu0 0.0
  %267 = vmatprep.subr.mxu0 0.0
  %268 = vmatpush2.msra.mxu0 0.0
  %269 = vmatprep.subr.mxu0 0.0
  %270 = vmatpush2.msra.mxu0 0.0
  %271 = vmatprep.subr.mxu0 0.0
  %272 = vmatpush2.msra.mxu0 0.0
  %273 = vmatprep.subr.mxu0 0.0
  %274 = vmatpush2.msra.mxu0 0.0
  %275 = vmatprep.subr.mxu0 0.0
  %276 = vmatpush2.msra.mxu0 0.0
  %277 = vmatprep.subr.mxu0 0.0
  %278 = vmatpush2.msra.mxu0 0.0
  %279 = vmatprep.subr.mxu0 0.0
  %280 = vmatpush2.msra.mxu0 0.0
  %281 = vmatprep.subr.mxu0 0.0
  %282 = vmatpush2.msra.mxu0 0.0
  %283 = vmatprep.subr.mxu0 0.0
  %284 = vmatpush2.msra.mxu0 0.0
  %285 = vmatprep.subr.mxu0 0.0
  %286 = vmatpush2.msra.mxu0 0.0
  %287 = vmatprep.subr.mxu0 0.0
  %288 = vmatpush2.msra.mxu0 0.0
  %289 = vmatprep.subr.mxu0 0.0
  %290 = vmatpush2.msra.mxu0 0.0
  %291 = vmatprep.subr.mxu0 0.0
  %292 = vmatpush2.msra.mxu0 0.0
  %293 = vmatprep.subr.mxu0 0.0
  %294 = vmatpush2.msra.mxu0 0.0
  %295 = vmatprep.mubr.f32.mxu0 0.0
  %296 = vmatmul.mubr.f32.gmra.mxu0 %v214
  %v297 = vpop.f32.mrf.mxu0
  %v298 = vadd.f32 %v211, %v297
  %v299 = vpop.f32.mrf.mxu0
  %300 = vmatprep.mubr.f32.mxu0 0.0
  %301 = vmatmul.mubr.f32.gmra.mxu0 %v217
  %v302 = vpop.f32.mrf.mxu0
  %v303 = vadd.f32 %v211, %v302
  %v304 = vpop.f32.mrf.mxu0
  %305 = vmatprep.mubr.f32.mxu0 0.0
  %306 = vmatmul.mubr.f32.gmra.mxu0 %v220
  %v307 = vpop.f32.mrf.mxu0
  %v308 = vadd.f32 %v211, %v307
  %v309 = vpop.f32.mrf.mxu0
  %310 = vmatprep.mubr.f32.mxu0 0.0
  %311 = vmatmul.mubr.f32.gmra.mxu0 %v223
  %v312 = vpop.f32.mrf.mxu0
  %v313 = vadd.f32 %v211, %v312
  %v314 = vpop.f32.mrf.mxu0
  %315 = vmatprep.mubr.f32.mxu0 0.0
  %316 = vmatmul.mubr.f32.gmra.mxu0 %v226
  %v317 = vpop.f32.mrf.mxu0
  %v318 = vadd.f32 %v211, %v317
  %v319 = vpop.f32.mrf.mxu0
  %320 = vmatprep.mubr.f32.mxu0 0.0
  %321 = vmatmul.mubr.f32.gmra.mxu0 %v229
  %v322 = vpop.f32.mrf.mxu0
  %v323 = vadd.f32 %v211, %v322
  %v324 = vpop.f32.mrf.mxu0
  %325 = vdwg.mxu0
  %vm326 = vcmask 15360
  %v327 = vsel %vm326, %v298, -inf
  %328 = vmax.xlane.f32.xlu0 %v327
  %v329 = vpop.xlane.xlu0 %328
  %v330 = vsel %vm326, %v303, -inf
  %331 = vmax.xlane.f32.xlu0 %v330
  %v332 = vpop.xlane.xlu0 %331
  %v333 = vsel %vm326, %v308, -inf
  %334 = vmax.xlane.f32.xlu0 %v333
  %v335 = vpop.xlane.xlu0 %334
  %v336 = vsel %vm326, %v313, -inf
  %337 = vmax.xlane.f32.xlu0 %v336
  %v338 = vpop.xlane.xlu0 %337
  %v339 = vsel %vm326, %v318, -inf
  %340 = vmax.xlane.f32.xlu0 %v339
  %v341 = vpop.xlane.xlu0 %340
  %v342 = vsel %vm326, %v323, -inf
  %343 = vmax.xlane.f32.xlu0 %v342
  %v344 = vpop.xlane.xlu0 %343
  %v345 = vsub.f32 %v298, %v329
  %v346 = vsub.f32 %v303, %v332
  %v347 = vsub.f32 %v308, %v335
  %v348 = vsub.f32 %v313, %v338
  %v349 = vsub.f32 %v318, %v341
  %v350 = vsub.f32 %v323, %v344
  %v351 = vmul.f32 %v345, 1.442695
  %v352 = vpow.pop %v351
  %v353 = vmul.f32 %v346, 1.442695
  %v354 = vpow.pop %v353
  %v355 = vmul.f32 %v347, 1.442695
  %v356 = vpow.pop %v355
  %v357 = vmul.f32 %v348, 1.442695
  %v358 = vpow.pop %v357
  %v359 = vmul.f32 %v349, 1.442695
  %v360 = vpow.pop %v359
  %v361 = vmul.f32 %v350, 1.442695
  %v362 = vpow.pop %v361
  %v363 = vsel %vm326, %v352, 0.0
  %364 = vadd.xlane.f32.xlu0 %v363
  %v365 = vpop.xlane.xlu0 %364
  %v366 = vsel %vm326, %v354, 0.0
  %367 = vadd.xlane.f32.xlu0 %v366
  %v368 = vpop.xlane.xlu0 %367
  %v369 = vsel %vm326, %v356, 0.0
  %370 = vadd.xlane.f32.xlu0 %v369
  %v371 = vpop.xlane.xlu0 %370
  %v372 = vsel %vm326, %v358, 0.0
  %373 = vadd.xlane.f32.xlu0 %v372
  %v374 = vpop.xlane.xlu0 %373
  %v375 = vsel %vm326, %v360, 0.0
  %376 = vadd.xlane.f32.xlu0 %v375
  %v377 = vpop.xlane.xlu0 %376
  %v378 = vsel %vm326, %v362, 0.0
  %379 = vadd.xlane.f32.xlu0 %v378
  %v380 = vpop.xlane.xlu0 %379
  %v381 = vlog2.pop %v365
  %v382 = vmul.f32 %v381, 0.6931472
  %v383 = vlog2.pop %v368
  %v384 = vmul.f32 %v383, 0.6931472
  %v385 = vlog2.pop %v371
  %v386 = vmul.f32 %v385, 0.6931472
  %v387 = vlog2.pop %v374
  %v388 = vmul.f32 %v387, 0.6931472
  %v389 = vlog2.pop %v377
  %v390 = vmul.f32 %v389, 0.6931472
  %v391 = vlog2.pop %v380
  %v392 = vmul.f32 %v391, 0.6931472
  %v393 = vadd.f32 %v329, %v382
  %v394 = vadd.f32 %v332, %v384
  %v395 = vadd.f32 %v335, %v386
  %v396 = vadd.f32 %v338, %v388
  %v397 = vadd.f32 %v341, %v390
  %v398 = vadd.f32 %v344, %v392
  %v399 = vmul.f32 %v298, %v29
  %v400 = vmul.f32 %v303, %v30
  %v401 = vmul.f32 %v308, %v31
  %v402 = vmul.f32 %v313, %v32
  %v403 = vmul.f32 %v318, %v33
  %v404 = vmul.f32 %v323, %v34
  %v405 = vsel %vm326, %v399, 0.0
  %406 = vadd.xlane.f32.xlu0 %v405
  %v407 = vpop.xlane.xlu0 %406
  %v408 = vsel %vm326, %v400, 0.0
  %409 = vadd.xlane.f32.xlu0 %v408
  %v410 = vpop.xlane.xlu0 %409
  %v411 = vsel %vm326, %v401, 0.0
  %412 = vadd.xlane.f32.xlu0 %v411
  %v413 = vpop.xlane.xlu0 %412
  %v414 = vsel %vm326, %v402, 0.0
  %415 = vadd.xlane.f32.xlu0 %v414
  %v416 = vpop.xlane.xlu0 %415
  %v417 = vsel %vm326, %v403, 0.0
  %418 = vadd.xlane.f32.xlu0 %v417
  %v419 = vpop.xlane.xlu0 %418
  %v420 = vsel %vm326, %v404, 0.0
  %421 = vadd.xlane.f32.xlu0 %v420
  %v422 = vpop.xlane.xlu0 %421
  %v423 = vsub.f32 %v393, %v407
  %v424 = vsub.f32 %v394, %v410
  %v425 = vsub.f32 %v395, %v413
  %v426 = vsub.f32 %v396, %v416
  %v427 = vsub.f32 %v397, %v419
  %v428 = vsub.f32 %v398, %v422
  %435 = vrot.lane.b32.xlu0 %v191, 96
  %v436 = vpop.permute.xlu0 %435
  %437 = vrot.lane.b32.xlu0 %v193, 96
  %v438 = vpop.permute.xlu0 %437
  %439 = vrot.lane.b32.xlu0 %v195, 96
  %v440 = vpop.permute.xlu0 %439
  %441 = vrot.lane.b32.xlu0 %v197, 96
  %v442 = vpop.permute.xlu0 %441
  %443 = vrot.lane.b32.xlu0 %v199, 96
  %v444 = vpop.permute.xlu0 %443
  %445 = vrot.lane.b32.xlu0 %v201, 96
  %v446 = vpop.permute.xlu0 %445
  %vm453 = vcmask 7168
  %v454 = vsel %vm453, %v436, %v423
  %v455 = vsel %vm453, %v438, %v424
  %v456 = vsel %vm453, %v440, %v425
  %v457 = vsel %vm453, %v442, %v426
  %v458 = vsel %vm453, %v444, %v427
  %v459 = vsel %vm453, %v446, %v428
  %v460 = vlaneseq
  %v461 = vand.u32 %v460, 127
  %vm462 = vcmp.ge.s32.totalorder %v461, 0
  %vm463 = vcmp.lt.s32.totalorder %v461, 16
  %vm464 = vmand %vm462, %vm463
  %v465 = vsel %vm464, 1, 0
  %v466 = vcvt.s32.f32 %v465
  %v467 = vmul.f32 %v466, 0.0625
  %vm468 = vcmp.ge.s32.totalorder %v461, 16
  %vm469 = vcmp.lt.s32.totalorder %v461, 32
  %vm470 = vmand %vm468, %vm469
  %v471 = vsel %vm470, 1, 0
  %v472 = vcvt.s32.f32 %v471
  %v473 = vmul.f32 %v472, 0.0625
  %vm474 = vcmp.ge.s32.totalorder %v461, 32
  %vm475 = vcmp.lt.s32.totalorder %v461, 48
  %vm476 = vmand %vm474, %vm475
  %v477 = vsel %vm476, 1, 0
  %v478 = vcvt.s32.f32 %v477
  %v479 = vmul.f32 %v478, 0.0625
  %vm480 = vcmask 1040384
  %v481 = vsel %vm480, %v467, %v473
  %vm482 = vcmask 1041408
  %v483 = vsel %vm482, %v481, %v479
  %vm484 = vcmask 392192
  %v486 = vsel %vm484, %v483, 0
  %488 = vmatprep.subr.mxu0 0.0
  %489 = vmatpush1.msra.mxu0 0.0
  %490 = vmatprep.subr.mxu0 0.0
  %491 = vmatpush1.msra.mxu0 0.0
  %492 = vmatprep.subr.mxu0 0.0
  %493 = vmatpush1.msra.mxu0 0.0
  %494 = vmatprep.subr.mxu0 0.0
  %495 = vmatpush1.msra.mxu0 0.0
  %496 = vmatprep.subr.mxu0 0.0
  %497 = vmatpush1.msra.mxu0 0.0
  %498 = vmatprep.subr.mxu0 0.0
  %499 = vmatpush1.msra.mxu0 0.0
  %500 = vmatprep.subr.mxu0 0.0
  %501 = vmatpush1.msra.mxu0 0.0
  %502 = vmatprep.subr.mxu0 0.0
  %503 = vmatpush1.msra.mxu0 0.0
  %504 = vmatprep.subr.mxu0 0.0
  %505 = vmatpush1.msra.mxu0 0.0
  %506 = vmatprep.subr.mxu0 0.0
  %507 = vmatpush1.msra.mxu0 0.0
  %508 = vmatprep.subr.mxu0 0.0
  %509 = vmatpush1.msra.mxu0 %v459
  %510 = vmatprep.subr.mxu0 0.0
  %511 = vmatpush1.msra.mxu0 %v458
  %512 = vmatprep.subr.mxu0 0.0
  %513 = vmatpush1.msra.mxu0 %v457
  %514 = vmatprep.subr.mxu0 0.0
  %515 = vmatpush1.msra.mxu0 %v456
  %516 = vmatprep.subr.mxu0 0.0
  %517 = vmatpush1.msra.mxu0 %v455
  %518 = vmatprep.subr.mxu0 0.0
  %519 = vmatpush1.msra.mxu0 %v454
  %520 = vmatprep.subr.mxu0 0.0
  %521 = vmatpush2.msra.mxu0 0.0
  %522 = vmatprep.subr.mxu0 0.0
  %523 = vmatpush2.msra.mxu0 0.0
  %524 = vmatprep.subr.mxu0 0.0
  %525 = vmatpush2.msra.mxu0 0.0
  %526 = vmatprep.subr.mxu0 0.0
  %527 = vmatpush2.msra.mxu0 0.0
  %528 = vmatprep.subr.mxu0 0.0
  %529 = vmatpush2.msra.mxu0 0.0
  %530 = vmatprep.subr.mxu0 0.0
  %531 = vmatpush2.msra.mxu0 0.0
  %532 = vmatprep.subr.mxu0 0.0
  %533 = vmatpush2.msra.mxu0 0.0
  %534 = vmatprep.subr.mxu0 0.0
  %535 = vmatpush2.msra.mxu0 0.0
  %536 = vmatprep.subr.mxu0 0.0
  %537 = vmatpush2.msra.mxu0 0.0
  %538 = vmatprep.subr.mxu0 0.0
  %539 = vmatpush2.msra.mxu0 0.0
  %540 = vmatprep.subr.mxu0 0.0
  %541 = vmatpush2.msra.mxu0 0.0
  %542 = vmatprep.subr.mxu0 0.0
  %543 = vmatpush2.msra.mxu0 0.0
  %544 = vmatprep.subr.mxu0 0.0
  %545 = vmatpush2.msra.mxu0 0.0
  %546 = vmatprep.subr.mxu0 0.0
  %547 = vmatpush2.msra.mxu0 0.0
  %548 = vmatprep.subr.mxu0 0.0
  %549 = vmatpush2.msra.mxu0 0.0
  %550 = vmatprep.subr.mxu0 0.0
  %551 = vmatpush2.msra.mxu0 0.0
  %552 = vmatprep.mubr.f32.mxu0 0.0
  %553 = vmatmul.mubr.f32.gmra.mxu0 %v486
  %v554 = vpop.f32.mrf.mxu0
  %v555 = vadd.f32 0.0, %v554
  %v556 = vpop.f32.mrf.mxu0
  %557 = vdwg.mxu0
  %vm558 = vcmask 10240
  %559 = vst.msk [vmem:[%s6] sm:$0x7] %vm558, %v555
  // Predicated region
  $region26: #{msgda_forward.9} parent=0 // pred_check
    _
  $region27: #{msgda_forward.9} parent=0 // pred_check_branch
    %561 = sbr.rel (0) target = $region29
  $region28: #{msgda_forward.9} parent=0 // pred_region
    _
  $region29: #{msgda_forward.9} parent=0 // pred_fallthru
    _
  // Predicated region
  $region30: #{msgda_forward.9} parent=0 // pred_check
    _
  $region31: #{msgda_forward.9} parent=0 // pred_check_branch
    %563 = sbr.rel (0) target = $region33
  $region32: #{msgda_forward.9} parent=0 // pred_region
    _
  $region33: #{msgda_forward.9} parent=0 // pred_fallthru
    _

// kernel: msgda_forward.8
$region0: #{msgda_forward.8}
  #allocation0 [shape = 'u32[]', space=smem, size = 0x4, offset = 0x4, fixed_abs, tag = 'smem constant byte address 0x4 - core index']
  #allocation1 [shape = 'u32[144,128]{1,0:T(1,128)}', space=vmem, size = 0x12000, scoped, tag = 'internal scratch']
  %s0 = inlined_call_operand.vmem [shape: f32[32,16], index: 0, kind: input, shape index: {}]
  %s1 = inlined_call_operand.vmem [shape: f32[16,20], index: 1, kind: input, shape index: {}]
  %s2 = inlined_call_operand.vmem [shape: f32[32,20], index: 2, kind: output, shape index: {}]
  %s3 = sld [smem:[#allocation0]]
  $region18: #{msgda_forward.8} parent=0
    _
  %s5 = ssub.s32 1, %s3
  %s6 = scalar_select 0, %s5, %s3
  // Predicated region
  $region2: #{msgda_forward.8} parent=0 // pred_check
    _
  $region3: #{msgda_forward.8} parent=0 // pred_check_branch
    %8 = sbr.rel (0) target = $region5
  $region4: #{msgda_forward.8} parent=0 // pred_region
    _
  $region5: #{msgda_forward.8} parent=0 // pred_fallthru
    _
  // Predicated region
  $region6: #{msgda_forward.8} parent=0 // pred_check
    _
  $region7: #{msgda_forward.8} parent=0 // pred_check_branch
    %10 = sbr.rel (0) target = $region9
  $region8: #{msgda_forward.8} parent=0 // pred_region
    _
  $region9: #{msgda_forward.8} parent=0 // pred_fallthru
    _
  %v11 = vld [vmem:[%s0] sm:$0xff]
  %v12 = vld [vmem:[%s0 + $0x8] sm:$0xff]
  %v13 = vld [vmem:[%s0 + $0x10] sm:$0xff]
  %v14 = vld [vmem:[%s0 + $0x18] sm:$0xff]
  %v15 = vld [vmem:[%s1] sm:$0xff]
  %v16 = vld [vmem:[%s1 + $0x8] sm:$0xff]
  %vm17 = vcmask 130048
  %v19 = vsel %vm17, %v11, 0
  %v22 = vsel %vm17, %v12, 0
  %v25 = vsel %vm17, %v13, 0
  %v28 = vsel %vm17, %v14, 0
  %30 = vmatprep.subr.mxu0 0.0
  %31 = vmatpush1.msra.mxu0 0.0
  %32 = vmatprep.subr.mxu0 0.0
  %33 = vmatpush1.msra.mxu0 0.0
  %34 = vmatprep.subr.mxu0 0.0
  %35 = vmatpush1.msra.mxu0 0.0
  %36 = vmatprep.subr.mxu0 0.0
  %37 = vmatpush1.msra.mxu0 0.0
  %38 = vmatprep.subr.mxu0 0.0
  %39 = vmatpush1.msra.mxu0 0.0
  %40 = vmatprep.subr.mxu0 0.0
  %41 = vmatpush1.msra.mxu0 0.0
  %42 = vmatprep.subr.mxu0 0.0
  %43 = vmatpush1.msra.mxu0 0.0
  %44 = vmatprep.subr.mxu0 0.0
  %45 = vmatpush1.msra.mxu0 0.0
  %46 = vmatprep.subr.mxu0 0.0
  %47 = vmatpush1.msra.mxu0 0.0
  %48 = vmatprep.subr.mxu0 0.0
  %49 = vmatpush1.msra.mxu0 0.0
  %50 = vmatprep.subr.mxu0 0.0
  %51 = vmatpush1.msra.mxu0 0.0
  %52 = vmatprep.subr.mxu0 0.0
  %53 = vmatpush1.msra.mxu0 0.0
  %54 = vmatprep.subr.mxu0 0.0
  %55 = vmatpush1.msra.mxu0 0.0
  %56 = vmatprep.subr.mxu0 0.0
  %57 = vmatpush1.msra.mxu0 0.0
  %58 = vmatprep.subr.mxu0 0.0
  %59 = vmatpush1.msra.mxu0 %v16
  %60 = vmatprep.subr.mxu0 0.0
  %61 = vmatpush1.msra.mxu0 %v15
  %62 = vmatprep.subr.mxu0 0.0
  %63 = vmatpush2.msra.mxu0 0.0
  %64 = vmatprep.subr.mxu0 0.0
  %65 = vmatpush2.msra.mxu0 0.0
  %66 = vmatprep.subr.mxu0 0.0
  %67 = vmatpush2.msra.mxu0 0.0
  %68 = vmatprep.subr.mxu0 0.0
  %69 = vmatpush2.msra.mxu0 0.0
  %70 = vmatprep.subr.mxu0 0.0
  %71 = vmatpush2.msra.mxu0 0.0
  %72 = vmatprep.subr.mxu0 0.0
  %73 = vmatpush2.msra.mxu0 0.0
  %74 = vmatprep.subr.mxu0 0.0
  %75 = vmatpush2.msra.mxu0 0.0
  %76 = vmatprep.subr.mxu0 0.0
  %77 = vmatpush2.msra.mxu0 0.0
  %78 = vmatprep.subr.mxu0 0.0
  %79 = vmatpush2.msra.mxu0 0.0
  %80 = vmatprep.subr.mxu0 0.0
  %81 = vmatpush2.msra.mxu0 0.0
  %82 = vmatprep.subr.mxu0 0.0
  %83 = vmatpush2.msra.mxu0 0.0
  %84 = vmatprep.subr.mxu0 0.0
  %85 = vmatpush2.msra.mxu0 0.0
  %86 = vmatprep.subr.mxu0 0.0
  %87 = vmatpush2.msra.mxu0 0.0
  %88 = vmatprep.subr.mxu0 0.0
  %89 = vmatpush2.msra.mxu0 0.0
  %90 = vmatprep.subr.mxu0 0.0
  %91 = vmatpush2.msra.mxu0 0.0
  %92 = vmatprep.subr.mxu0 0.0
  %93 = vmatpush2.msra.mxu0 0.0
  %94 = vmatprep.mubr.f32.mxu0 0.0
  %95 = vmatmul.mubr.f32.gmra.mxu0 %v19
  %v96 = vpop.f32.mrf.mxu0
  %v97 = vadd.f32 0.0, %v96
  %v98 = vpop.f32.mrf.mxu0
  %99 = vmatprep.mubr.f32.mxu0 0.0
  %100 = vmatmul.mubr.f32.gmra.mxu0 %v22
  %v101 = vpop.f32.mrf.mxu0
  %v102 = vadd.f32 0.0, %v101
  %v103 = vpop.f32.mrf.mxu0
  %104 = vmatprep.mubr.f32.mxu0 0.0
  %105 = vmatmul.mubr.f32.gmra.mxu0 %v25
  %v106 = vpop.f32.mrf.mxu0
  %v107 = vadd.f32 0.0, %v106
  %v108 = vpop.f32.mrf.mxu0
  %109 = vmatprep.mubr.f32.mxu0 0.0
  %110 = vmatmul.mubr.f32.gmra.mxu0 %v28
  %v111 = vpop.f32.mrf.mxu0
  %v112 = vadd.f32 0.0, %v111
  %v113 = vpop.f32.mrf.mxu0
  %114 = vdwg.mxu0
  %vm115 = vcmask 162816
  %116 = vst.msk [vmem:[%s2] sm:$0xff] %vm115, %v97
  %117 = vst.msk [vmem:[%s2 + $0x8] sm:$0xff] %vm115, %v102
  %118 = vst.msk [vmem:[%s2 + $0x10] sm:$0xff] %vm115, %v107
  %119 = vst.msk [vmem:[%s2 + $0x18] sm:$0xff] %vm115, %v112
  // Predicated region
  $region10: #{msgda_forward.8} parent=0 // pred_check
    _
  $region11: #{msgda_forward.8} parent=0 // pred_check_branch
    %121 = sbr.rel (0) target = $region13
  $region12: #{msgda_forward.8} parent=0 // pred_region
    _
  $region13: #{msgda_forward.8} parent=0 // pred_fallthru
    _
  // Predicated region
  $region14: #{msgda_forward.8} parent=0 // pred_check
    _
  $region15: #{msgda_forward.8} parent=0 // pred_check_branch
    %123 = sbr.rel (0) target = $region17
  $region16: #{msgda_forward.8} parent=0 // pred_region
    _
  $region17: #{msgda_forward.8} parent=0 // pred_fallthru
    _

</llo_original>
